<compile_context>
chip_gen: v5e
topology: v5e:2x2
jax: 0.10.0
libtpu: 0.0.40
codegen_flags: <defaults>
</compile_context>

<pallas_src>
import functools

import jax
import jax.numpy as jnp
from jax import lax
from jax.experimental import pallas as pl
from jax.experimental.pallas import tpu as pltpu


def _round_up(v, m):
    return (v + m - 1) // m * m


def _pick_tile_n(n):
    for t in (1024, 512, 256, 128):
        if n % t == 0:
            return t
    raise ValueError(f"dimension {n} must be a multiple of 128")


def _pick_tile_k(kp, tn, w_itemsize, budget_bytes=20 << 20):
    """Largest multiple-of-128 divisor of kp whose double-buffered (tk, tn)
    weight block fits the byte budget (keeps the plan under the 32 MiB
    vmem_limit on every TPU generation)."""
    best = 128
    for d in range(128, kp + 1, 128):
        if kp % d == 0 and d * tn * w_itemsize * 2 <= budget_bytes:
            best = d
    return best


# ----------------------------- RoI max-pool kernel ---------------------------

def _roi_pool_kernel(bins_ref, feat_ref, out_ref, stage_ref, *, W, C, P, RB):
    # bins_ref : SMEM int32[Npad*4*P]  per roi: hstart[P], hend[P], wstart[P], wend[P]
    # feat_ref : VMEM f32[H, W, C]     (W on sublanes, C on lanes; H leading)
    # out_ref  : VMEM bf16[RB, P*P, C] (RB ROIs per grid step)
    # stage_ref: VMEM f32[P*P, C]      per-ROI staging buffer
    blk = pl.program_id(0)
    wcol = lax.broadcasted_iota(jnp.int32, (W, 1), 0)            # col idx on sublanes
    neg = jnp.float32(-jnp.inf)
    neg_band = jnp.full((W, C), -jnp.inf, jnp.float32)           # hoisted broadcast
    zero_bin = jnp.zeros((1, C), jnp.float32)

    @pl.loop(0, RB)
    def _roi(r):
        base = (blk * RB + r) * (4 * P)

        # column-bin masks + scalar validity, shared by all 7 row bands
        wmasks, wvalid = [], []
        for pw in range(P):
            ws = bins_ref[base + 2 * P + pw]
            we = bins_ref[base + 3 * P + pw]
            wmasks.append((wcol >= ws) & (wcol < we))            # (W, 1)
            wvalid.append(we > ws)

        for ph in range(P):
            hs = bins_ref[base + ph]
            he = bins_ref[base + P + ph]
            hval = he > hs

            # stage 1: max over the band's own rows only (dynamic-bound loop,
            # one (W, C) row load per row; no masks, no full-H scan).
            def _row(h, acc):
                return jnp.maximum(acc, feat_ref[h])
            band = lax.fori_loop(hs, he, _row, neg_band)         # (W, C)

            for pw in range(P):
                # stage 2: small masked max over W (cross-sublane reduce)
                mx = jnp.max(jnp.where(wmasks[pw], band, neg),
                             axis=0, keepdims=True)              # (1, C)
                ok = jnp.logical_and(hval, wvalid[pw])           # scalar emptiness test
                # empty bin -> 0 (torchvision); store immediately, keep vregs flat
                stage_ref[pl.ds(ph * P + pw, 1), :] = jnp.where(ok, mx, zero_bin)

        # one wide lane-dense bf16 store per ROI
        out_ref[pl.ds(r, 1), :, :] = stage_ref[...][None].astype(out_ref.dtype)


def roi_pool(feat_hwc, bins_2d, *, P, n_pad, RB=8):
    # feat_hwc: (H, W, C) f32 ; bins_2d: (N, 4*P) int32
    # returns (n_pad, P*P, C) bf16; rows >= N are zero (padded ROIs have empty bins).
    H, W, C = feat_hwc.shape
    N = bins_2d.shape[0]
    assert n_pad % RB == 0 and n_pad >= N
    if n_pad != N:
        bins_2d = jnp.pad(bins_2d, ((0, n_pad - N), (0, 0)))
    bins_flat = bins_2d.reshape(-1)
    # NOTE: at the demo's C=8 only 8/128 lanes are used; the real module (VGG16,
    # C=512) is lane-dense, so no re-layout is done here.
    return pl.pallas_call(
        functools.partial(_roi_pool_kernel, W=W, C=C, P=P, RB=RB),
        out_shape=jax.ShapeDtypeStruct((n_pad, P * P, C), jnp.bfloat16),
        grid_spec=pltpu.PrefetchScalarGridSpec(
            num_scalar_prefetch=0,
            grid=(n_pad // RB,),
            in_specs=[
                pl.BlockSpec(memory_space=pltpu.MemorySpace.SMEM),  # bin bounds (scalars)
                # full feature map; constant index_map -> DMA'd once for the whole grid.
                # TODO(synk): pipeline_mode=pl.Buffered(1) would halve this block's
                # VMEM footprint on v7x (constant block gains nothing from 2 buffers).
                pl.BlockSpec((H, W, C), lambda i: (0, 0, 0)),
            ],
            out_specs=pl.BlockSpec((RB, P * P, C), lambda i: (i, 0, 0)),
            scratch_shapes=[pltpu.VMEM((P * P, C), jnp.float32)],
        ),
        compiler_params=pltpu.CompilerParams(dimension_semantics=("parallel",)),
    )(bins_flat, feat_hwc)


# ------------------------ tiled Linear(+bias[+ReLU]) kernel -------------------

def _linear_kernel(x_ref, w_ref, b_ref, o_ref, acc_ref, *, relu):
    @pl.when(pl.program_id(2) == 0)
    def _zero():
        acc_ref[...] = jnp.zeros_like(acc_ref)

    # (bf16|f32) x (bf16|f32) -> f32 accumulate on the MXU
    acc_ref[...] += jnp.dot(x_ref[...], w_ref[...],
                            preferred_element_type=jnp.float32)

    @pl.when(pl.program_id(2) == pl.num_programs(2) - 1)
    def _store():
        out = acc_ref[...] + b_ref[...]
        if relu:
            out = jnp.maximum(out, 0.0)
        o_ref[...] = out.astype(o_ref.dtype)


def linear_padded(xp, wp, bp, *, relu=False, out_dtype=jnp.float32):
    # xp: (Mp, Kp), wp: (Kp, Np), bp: (1, Np) — all dims already padded to 128 multiples.
    Mp, Kp = xp.shape
    Kp2, Np = wp.shape
    assert Kp == Kp2 and Mp % 128 == 0 and Kp % 128 == 0 and Np % 128 == 0
    tm = 256 if Mp % 256 == 0 else 128
    tn = _pick_tile_n(Np)                               # N=4096 -> 4 j-blocks (megacore)
    tk = _pick_tile_k(Kp, tn, wp.dtype.itemsize)        # K=25088 -> tk=3584 (7 k-steps)
    return pl.pallas_call(
        functools.partial(_linear_kernel, relu=relu),
        out_shape=jax.ShapeDtypeStruct((Mp, Np), out_dtype),
        grid_spec=pltpu.PrefetchScalarGridSpec(
            num_scalar_prefetch=0,
            grid=(Mp // tm, Np // tn, Kp // tk),
            in_specs=[
                pl.BlockSpec((tm, tk), lambda i, j, k: (i, k)),
                pl.BlockSpec((tk, tn), lambda i, j, k: (k, j)),
                pl.BlockSpec((1, tn), lambda i, j, k: (0, j)),
            ],
            out_specs=pl.BlockSpec((tm, tn), lambda i, j, k: (i, j)),
            scratch_shapes=[pltpu.VMEM((tm, tn), jnp.float32)],
        ),
        compiler_params=pltpu.CompilerParams(
            dimension_semantics=("parallel", "parallel", "arbitrary"),
            vmem_limit_bytes=32 << 20,                  # explicit: safe on v5e/v6e/v7x
        ),
    )(xp, wp, bp)


# --------------------------------- RoIHead ------------------------------------

class RoIHead:
    POOL = 7
    SPATIAL_SCALE = 1.0 / 16.0
    FC = 4096  # matches nn.Linear(4096, ...) hard-coded in the module

    def __init__(self, n_class, in_channels, key):
        self.n_class = n_class
        self.in_channels = in_channels
        P, FC = self.POOL, self.FC
        d_in = in_channels * P * P
        self.d_in = d_in
        self.Kp6 = _round_up(d_in, 128)
        k = jax.random.split(key, 4)

        # classifier = VGG16 tail: Linear(d_in,4096)+ReLU, Linear(4096,4096)+ReLU
        # w_fc6 is generated in PyTorch row order (c*49 + ph*7 + pw) and permuted once
        # to the kernel's pooled layout ((ph*7+pw)*C + c), so no runtime transpose of
        # the pooled tensor is needed. Real PyTorch weights would be permuted the same way.
        w_fc6_t = jax.random.normal(k[0], (d_in, FC), jnp.float32) * 0.01
        q = jnp.arange(d_in)
        perm = (q % in_channels) * (P * P) + (q // in_channels)
        w_fc6 = w_fc6_t[perm]
        # pad + cast to bf16 ONCE (weight streaming is the bottleneck of the head).
        # TODO(synk): generation-gated weight quantization (int8 on v5e/v6e, fp8 on
        # v7x) would halve fc6/fc7 streaming again; kept bf16 here for accuracy parity.
        self.w_fc6 = jnp.pad(w_fc6, ((0, self.Kp6 - d_in), (0, 0))).astype(jnp.bfloat16)
        self.b_fc6 = jnp.zeros((1, FC), jnp.float32)
        self.w_fc7 = (jax.random.normal(k[1], (FC, FC), jnp.float32) * 0.01).astype(jnp.bfloat16)
        self.b_fc7 = jnp.zeros((1, FC), jnp.float32)

        # normal_init(self.loc, 0, 0.001) ; normal_init(self.score, 0, 0.01) ; bias = 0
        # loc and score fused into one output matmul, kept in f32 (tiny; preserves the
        # std=0.001 loc weights exactly).
        w_loc = jax.random.normal(k[2], (FC, n_class * 4), jnp.float32) * 0.001
        w_score = jax.random.normal(k[3], (FC, n_class), jnp.float32) * 0.01
        n_head = n_class * 5
        self.Nhp = _round_up(n_head, 128)
        w_head = jnp.concatenate([w_loc, w_score], axis=1)            # (FC, n_class*5)
        self.w_head = jnp.pad(w_head, ((0, 0), (0, self.Nhp - n_head)))  # f32
        self.b_head = jnp.zeros((1, self.Nhp), jnp.float32)

    def _roi_bins(self, rois, H, W):
        # index / bounds glue (exact torchvision RoIPool arithmetic); the hot max loops
        # stay inside the Pallas kernel.
        P, s = self.POOL, self.SPATIAL_SCALE
        rsw = jnp.floor(rois[:, 0] * s + 0.5)
        rsh = jnp.floor(rois[:, 1] * s + 0.5)
        rew = jnp.floor(rois[:, 2] * s + 0.5)
        reh = jnp.floor(rois[:, 3] * s + 0.5)
        bin_w = jnp.maximum(rew - rsw + 1.0, 1.0) / P
        bin_h = jnp.maximum(reh - rsh + 1.0, 1.0) / P
        p = jnp.arange(P, dtype=jnp.float32)
        hstart = jnp.clip(jnp.floor(p[None] * bin_h[:, None]) + rsh[:, None], 0, H)
        hend = jnp.clip(jnp.ceil((p[None] + 1.0) * bin_h[:, None]) + rsh[:, None], 0, H)
        wstart = jnp.clip(jnp.floor(p[None] * bin_w[:, None]) + rsw[:, None], 0, W)
        wend = jnp.clip(jnp.ceil((p[None] + 1.0) * bin_w[:, None]) + rsw[:, None], 0, W)
        bins = jnp.concatenate([hstart, hend, wstart, wend], axis=1)   # (N, 4P)
        return bins.astype(jnp.int32)

    def __call__(self, x, rois):
        # x: (1, C, H, W) NCHW as in PyTorch; rois: (N, 4) = (xmin, ymin, xmax, ymax)
        _, C, H, W = x.shape
        N, P = rois.shape[0], self.POOL
        assert C * P * P == self.d_in
        # The batch-index column prepended in the PyTorch forward is always 0
        # (single image), so it is implicit here.
        feat = jnp.transpose(x[0], (1, 2, 0))                          # (H, W, C)
        bins = self._roi_bins(rois, H, W)

        Mp = _round_up(N, 128)
        pooled = roi_pool(feat, bins, P=P, n_pad=Mp)                   # (Mp, 49, C) bf16
        # contiguous (free) flatten; c*49+ph*7+pw order lives in the permuted fc6 weight
        x6 = pooled.reshape(Mp, P * P * C)
        if self.Kp6 != self.d_in:                                      # no-op at C=512
            x6 = jnp.pad(x6, ((0, 0), (0, self.Kp6 - self.d_in)))

        fc6 = linear_padded(x6, self.w_fc6, self.b_fc6, relu=True, out_dtype=jnp.bfloat16)
        fc7 = linear_padded(fc6, self.w_fc7, self.b_fc7, relu=True, out_dtype=jnp.float32)
        # TODO(synk): classifier Dropout layers omitted (eval-mode semantics).
        head = linear_padded(fc7, self.w_head, self.b_head, relu=False, out_dtype=jnp.float32)
        roi_locs = head[:N, : self.n_class * 4]
        roi_scores = head[:N, self.n_class * 4: self.n_class * 5]
        return roi_locs, roi_scores


if __name__ == "__main__":
    key = jax.random.PRNGKey(0)
    k_feat, k_roi, k_param = jax.random.split(key, 3)

    C, H, W = 8, 16, 16      # stride-16 feature map of a 256x256 image (small demo sizes)
    N_ROIS = 128
    N_CLASS = 5

    x = jax.random.normal(k_feat, (1, C, H, W), jnp.float32)
    xy = jax.random.uniform(k_roi, (N_ROIS, 2), minval=0.0, maxval=200.0)
    wh = jax.random.uniform(jax.random.fold_in(k_roi, 1), (N_ROIS, 2),
                            minval=16.0, maxval=80.0)
    rois = jnp.concatenate([xy, jnp.minimum(xy + wh, 255.0)], axis=1).astype(jnp.float32)

    head = RoIHead(N_CLASS, C, k_param)
    roi_locs, roi_scores = head(x, rois)
    jax.block_until_ready((roi_locs, roi_scores))

    assert roi_locs.shape == (N_ROIS, N_CLASS * 4)
    assert roi_scores.shape == (N_ROIS, N_CLASS)
    print("KERNEL_OK")
</pallas_src>

<mosaic_0001>
module attributes {stable_mosaic.version = 11 : i64} {
  func.func @_roi_pool_kernel(%arg0: i32, %arg1: memref<3584xi32, #tpu.memory_space<smem>>, %arg2: memref<16x16x8xf32, #tpu.memory_space<vmem>>, %arg3: memref<8x49x8xbf16, #tpu.memory_space<vmem>>, %arg4: memref<49x8xf32, #tpu.memory_space<vmem>>) attributes {dimension_semantics = [#tpu.dimension_semantics<parallel>], iteration_bounds = array<i64: 16>, scalar_prefetch = 0 : i64, scratch_operands = 1 : i64, tpu.core_type = #tpu.core_type<tc>, window_params = [{transform_indices = @transform_0, window_bounds = array<i64: 3584>}, {pipeline_mode = #tpu.pipeline_mode<synchronous>, transform_indices = @transform_1, window_bounds = array<i64: 16, 16, 8>}, {transform_indices = @transform_2, window_bounds = array<i64: 8, 49, 8>}]} {
    %0 = tpu.iota {dimensions = array<i32: 0>} : vector<16x1xi32>
    %cst = arith.constant 0xFF800000 : f32
    %1 = vector.broadcast %cst : f32 to vector<16x8xf32>
    %cst_0 = arith.constant 0.000000e+00 : f32
    %2 = vector.broadcast %cst_0 : f32 to vector<1x8xf32>
    %cst_1 = arith.constant 0xFF800000 : f32
    %c0_i32 = arith.constant 0 : i32
    %c8_i32 = arith.constant 8 : i32
    %3 = arith.addi %c0_i32, %c8_i32 : i32
    %c1_i32 = arith.constant 1 : i32
    scf.for %arg5 = %c0_i32 to %3 step %c1_i32  : i32 {
      %c1_i32_3 = arith.constant 1 : i32
      %4 = arith.muli %arg5, %c1_i32_3 : i32
      %c0_i32_4 = arith.constant 0 : i32
      %5 = arith.addi %c0_i32_4, %4 : i32
      %c8_i32_5 = arith.constant 8 : i32
      %6 = arith.muli %arg0, %c8_i32_5 : i32
      %7 = arith.addi %6, %5 : i32
      %c28_i32 = arith.constant 28 : i32
      %8 = arith.muli %7, %c28_i32 : i32
      %c14_i32 = arith.constant 14 : i32
      %9 = arith.addi %8, %c14_i32 : i32
      %c0_i32_6 = arith.constant 0 : i32
      %10 = arith.addi %9, %c0_i32_6 : i32
      %11 = arith.index_cast %10 : i32 to index
      %12 = memref.load %arg1[%11] : memref<3584xi32, #tpu.memory_space<smem>>
      %c21_i32 = arith.constant 21 : i32
      %13 = arith.addi %8, %c21_i32 : i32
      %c0_i32_7 = arith.constant 0 : i32
      %14 = arith.addi %13, %c0_i32_7 : i32
      %15 = arith.index_cast %14 : i32 to index
      %16 = memref.load %arg1[%15] : memref<3584xi32, #tpu.memory_space<smem>>
      %17 = vector.broadcast %12 : i32 to vector<16x1xi32>
      %18 = arith.cmpi sge, %0, %17 : vector<16x1xi32>
      %19 = vector.broadcast %16 : i32 to vector<16x1xi32>
      %20 = arith.cmpi slt, %0, %19 : vector<16x1xi32>
      %21 = arith.andi %18, %20 : vector<16x1xi1>
      %22 = arith.cmpi sgt, %16, %12 : i32
      %c14_i32_8 = arith.constant 14 : i32
      %23 = arith.addi %8, %c14_i32_8 : i32
      %c1_i32_9 = arith.constant 1 : i32
      %24 = arith.addi %23, %c1_i32_9 : i32
      %25 = arith.index_cast %24 : i32 to index
      %26 = memref.load %arg1[%25] : memref<3584xi32, #tpu.memory_space<smem>>
      %c21_i32_10 = arith.constant 21 : i32
      %27 = arith.addi %8, %c21_i32_10 : i32
      %c1_i32_11 = arith.constant 1 : i32
      %28 = arith.addi %27, %c1_i32_11 : i32
      %29 = arith.index_cast %28 : i32 to index
      %30 = memref.load %arg1[%29] : memref<3584xi32, #tpu.memory_space<smem>>
      %31 = vector.broadcast %26 : i32 to vector<16x1xi32>
      %32 = arith.cmpi sge, %0, %31 : vector<16x1xi32>
      %33 = vector.broadcast %30 : i32 to vector<16x1xi32>
      %34 = arith.cmpi slt, %0, %33 : vector<16x1xi32>
      %35 = arith.andi %32, %34 : vector<16x1xi1>
      %36 = arith.cmpi sgt, %30, %26 : i32
      %c14_i32_12 = arith.constant 14 : i32
      %37 = arith.addi %8, %c14_i32_12 : i32
      %c2_i32 = arith.constant 2 : i32
      %38 = arith.addi %37, %c2_i32 : i32
      %39 = arith.index_cast %38 : i32 to index
      %40 = memref.load %arg1[%39] : memref<3584xi32, #tpu.memory_space<smem>>
      %c21_i32_13 = arith.constant 21 : i32
      %41 = arith.addi %8, %c21_i32_13 : i32
      %c2_i32_14 = arith.constant 2 : i32
      %42 = arith.addi %41, %c2_i32_14 : i32
      %43 = arith.index_cast %42 : i32 to index
      %44 = memref.load %arg1[%43] : memref<3584xi32, #tpu.memory_space<smem>>
      %45 = vector.broadcast %40 : i32 to vector<16x1xi32>
      %46 = arith.cmpi sge, %0, %45 : vector<16x1xi32>
      %47 = vector.broadcast %44 : i32 to vector<16x1xi32>
      %48 = arith.cmpi slt, %0, %47 : vector<16x1xi32>
      %49 = arith.andi %46, %48 : vector<16x1xi1>
      %50 = arith.cmpi sgt, %44, %40 : i32
      %c14_i32_15 = arith.constant 14 : i32
      %51 = arith.addi %8, %c14_i32_15 : i32
      %c3_i32 = arith.constant 3 : i32
      %52 = arith.addi %51, %c3_i32 : i32
      %53 = arith.index_cast %52 : i32 to index
      %54 = memref.load %arg1[%53] : memref<3584xi32, #tpu.memory_space<smem>>
      %c21_i32_16 = arith.constant 21 : i32
      %55 = arith.addi %8, %c21_i32_16 : i32
      %c3_i32_17 = arith.constant 3 : i32
      %56 = arith.addi %55, %c3_i32_17 : i32
      %57 = arith.index_cast %56 : i32 to index
      %58 = memref.load %arg1[%57] : memref<3584xi32, #tpu.memory_space<smem>>
      %59 = vector.broadcast %54 : i32 to vector<16x1xi32>
      %60 = arith.cmpi sge, %0, %59 : vector<16x1xi32>
      %61 = vector.broadcast %58 : i32 to vector<16x1xi32>
      %62 = arith.cmpi slt, %0, %61 : vector<16x1xi32>
      %63 = arith.andi %60, %62 : vector<16x1xi1>
      %64 = arith.cmpi sgt, %58, %54 : i32
      %c14_i32_18 = arith.constant 14 : i32
      %65 = arith.addi %8, %c14_i32_18 : i32
      %c4_i32 = arith.constant 4 : i32
      %66 = arith.addi %65, %c4_i32 : i32
      %67 = arith.index_cast %66 : i32 to index
      %68 = memref.load %arg1[%67] : memref<3584xi32, #tpu.memory_space<smem>>
      %c21_i32_19 = arith.constant 21 : i32
      %69 = arith.addi %8, %c21_i32_19 : i32
      %c4_i32_20 = arith.constant 4 : i32
      %70 = arith.addi %69, %c4_i32_20 : i32
      %71 = arith.index_cast %70 : i32 to index
      %72 = memref.load %arg1[%71] : memref<3584xi32, #tpu.memory_space<smem>>
      %73 = vector.broadcast %68 : i32 to vector<16x1xi32>
      %74 = arith.cmpi sge, %0, %73 : vector<16x1xi32>
      %75 = vector.broadcast %72 : i32 to vector<16x1xi32>
      %76 = arith.cmpi slt, %0, %75 : vector<16x1xi32>
      %77 = arith.andi %74, %76 : vector<16x1xi1>
      %78 = arith.cmpi sgt, %72, %68 : i32
      %c14_i32_21 = arith.constant 14 : i32
      %79 = arith.addi %8, %c14_i32_21 : i32
      %c5_i32 = arith.constant 5 : i32
      %80 = arith.addi %79, %c5_i32 : i32
      %81 = arith.index_cast %80 : i32 to index
      %82 = memref.load %arg1[%81] : memref<3584xi32, #tpu.memory_space<smem>>
      %c21_i32_22 = arith.constant 21 : i32
      %83 = arith.addi %8, %c21_i32_22 : i32
      %c5_i32_23 = arith.constant 5 : i32
      %84 = arith.addi %83, %c5_i32_23 : i32
      %85 = arith.index_cast %84 : i32 to index
      %86 = memref.load %arg1[%85] : memref<3584xi32, #tpu.memory_space<smem>>
      %87 = vector.broadcast %82 : i32 to vector<16x1xi32>
      %88 = arith.cmpi sge, %0, %87 : vector<16x1xi32>
      %89 = vector.broadcast %86 : i32 to vector<16x1xi32>
      %90 = arith.cmpi slt, %0, %89 : vector<16x1xi32>
      %91 = arith.andi %88, %90 : vector<16x1xi1>
      %92 = arith.cmpi sgt, %86, %82 : i32
      %c14_i32_24 = arith.constant 14 : i32
      %93 = arith.addi %8, %c14_i32_24 : i32
      %c6_i32 = arith.constant 6 : i32
      %94 = arith.addi %93, %c6_i32 : i32
      %95 = arith.index_cast %94 : i32 to index
      %96 = memref.load %arg1[%95] : memref<3584xi32, #tpu.memory_space<smem>>
      %c21_i32_25 = arith.constant 21 : i32
      %97 = arith.addi %8, %c21_i32_25 : i32
      %c6_i32_26 = arith.constant 6 : i32
      %98 = arith.addi %97, %c6_i32_26 : i32
      %99 = arith.index_cast %98 : i32 to index
      %100 = memref.load %arg1[%99] : memref<3584xi32, #tpu.memory_space<smem>>
      %101 = vector.broadcast %96 : i32 to vector<16x1xi32>
      %102 = arith.cmpi sge, %0, %101 : vector<16x1xi32>
      %103 = vector.broadcast %100 : i32 to vector<16x1xi32>
      %104 = arith.cmpi slt, %0, %103 : vector<16x1xi32>
      %105 = arith.andi %102, %104 : vector<16x1xi1>
      %106 = arith.cmpi sgt, %100, %96 : i32
      %c0_i32_27 = arith.constant 0 : i32
      %107 = arith.addi %8, %c0_i32_27 : i32
      %108 = arith.index_cast %107 : i32 to index
      %109 = memref.load %arg1[%108] : memref<3584xi32, #tpu.memory_space<smem>>
      %c7_i32 = arith.constant 7 : i32
      %110 = arith.addi %8, %c7_i32 : i32
      %c0_i32_28 = arith.constant 0 : i32
      %111 = arith.addi %110, %c0_i32_28 : i32
      %112 = arith.index_cast %111 : i32 to index
      %113 = memref.load %arg1[%112] : memref<3584xi32, #tpu.memory_space<smem>>
      %114 = arith.cmpi sgt, %113, %109 : i32
      %115 = arith.subi %113, %109 : i32
      %116 = arith.addi %109, %115 : i32
      %c1_i32_29 = arith.constant 1 : i32
      %117 = scf.for %arg6 = %109 to %116 step %c1_i32_29 iter_args(%arg7 = %1) -> (vector<16x8xf32>)  : i32 {
        %630 = arith.index_cast %arg6 : i32 to index
        %c0_156 = arith.constant 0 : index
        %c0_157 = arith.constant 0 : index
        %631 = vector.load %arg2[%630, %c0_156, %c0_157] : memref<16x16x8xf32, #tpu.memory_space<vmem>>, vector<1x16x8xf32>
        %632 = vector.shape_cast %631 : vector<1x16x8xf32> to vector<16x8xf32>
        %633 = arith.maximumf %arg7, %632 : vector<16x8xf32>
        scf.yield %633 : vector<16x8xf32>
      }
      %118 = vector.shape_cast %21 : vector<16x1xi1> to vector<16x1xi1>
      %119 = vector.broadcast %118 : vector<16x1xi1> to vector<16x8xi1>
      %120 = vector.broadcast %cst_1 : f32 to vector<16x8xf32>
      %121 = arith.select %119, %117, %120 : vector<16x8xi1>, vector<16x8xf32>
      %cst_30 = arith.constant dense<0xFF800000> : vector<8xf32>
      %122 = vector.multi_reduction <maximumf>, %121, %cst_30 [0] : vector<16x8xf32> to vector<8xf32>
      %123 = vector.shape_cast %122 : vector<8xf32> to vector<1x8xf32>
      %124 = arith.andi %114, %22 : i1
      %125 = arith.select %124, %123, %2 : vector<1x8xf32>
      %c0 = arith.constant 0 : index
      %c0_31 = arith.constant 0 : index
      %126 = vector.load %arg4[%c0, %c0_31] : memref<49x8xf32, #tpu.memory_space<vmem>>, vector<1x8xf32>
      tpu.vector_store %arg4[%c0, %c0_31], %125 {strides = array<i32>} : memref<49x8xf32, #tpu.memory_space<vmem>>, vector<1x8xf32>,
      %127 = vector.shape_cast %35 : vector<16x1xi1> to vector<16x1xi1>
      %128 = vector.broadcast %127 : vector<16x1xi1> to vector<16x8xi1>
      %129 = vector.broadcast %cst_1 : f32 to vector<16x8xf32>
      %130 = arith.select %128, %117, %129 : vector<16x8xi1>, vector<16x8xf32>
      %cst_32 = arith.constant dense<0xFF800000> : vector<8xf32>
      %131 = vector.multi_reduction <maximumf>, %130, %cst_32 [0] : vector<16x8xf32> to vector<8xf32>
      %132 = vector.shape_cast %131 : vector<8xf32> to vector<1x8xf32>
      %133 = arith.andi %114, %36 : i1
      %134 = arith.select %133, %132, %2 : vector<1x8xf32>
      %c1 = arith.constant 1 : index
      %c0_33 = arith.constant 0 : index
      %135 = vector.load %arg4[%c1, %c0_33] : memref<49x8xf32, #tpu.memory_space<vmem>>, vector<1x8xf32>
      tpu.vector_store %arg4[%c1, %c0_33], %134 {strides = array<i32>} : memref<49x8xf32, #tpu.memory_space<vmem>>, vector<1x8xf32>,
      %136 = vector.shape_cast %49 : vector<16x1xi1> to vector<16x1xi1>
      %137 = vector.broadcast %136 : vector<16x1xi1> to vector<16x8xi1>
      %138 = vector.broadcast %cst_1 : f32 to vector<16x8xf32>
      %139 = arith.select %137, %117, %138 : vector<16x8xi1>, vector<16x8xf32>
      %cst_34 = arith.constant dense<0xFF800000> : vector<8xf32>
      %140 = vector.multi_reduction <maximumf>, %139, %cst_34 [0] : vector<16x8xf32> to vector<8xf32>
      %141 = vector.shape_cast %140 : vector<8xf32> to vector<1x8xf32>
      %142 = arith.andi %114, %50 : i1
      %143 = arith.select %142, %141, %2 : vector<1x8xf32>
      %c2 = arith.constant 2 : index
      %c0_35 = arith.constant 0 : index
      %144 = vector.load %arg4[%c2, %c0_35] : memref<49x8xf32, #tpu.memory_space<vmem>>, vector<1x8xf32>
      tpu.vector_store %arg4[%c2, %c0_35], %143 {strides = array<i32>} : memref<49x8xf32, #tpu.memory_space<vmem>>, vector<1x8xf32>,
      %145 = vector.shape_cast %63 : vector<16x1xi1> to vector<16x1xi1>
      %146 = vector.broadcast %145 : vector<16x1xi1> to vector<16x8xi1>
      %147 = vector.broadcast %cst_1 : f32 to vector<16x8xf32>
      %148 = arith.select %146, %117, %147 : vector<16x8xi1>, vector<16x8xf32>
      %cst_36 = arith.constant dense<0xFF800000> : vector<8xf32>
      %149 = vector.multi_reduction <maximumf>, %148, %cst_36 [0] : vector<16x8xf32> to vector<8xf32>
      %150 = vector.shape_cast %149 : vector<8xf32> to vector<1x8xf32>
      %151 = arith.andi %114, %64 : i1
      %152 = arith.select %151, %150, %2 : vector<1x8xf32>
      %c3 = arith.constant 3 : index
      %c0_37 = arith.constant 0 : index
      %153 = vector.load %arg4[%c3, %c0_37] : memref<49x8xf32, #tpu.memory_space<vmem>>, vector<1x8xf32>
      tpu.vector_store %arg4[%c3, %c0_37], %152 {strides = array<i32>} : memref<49x8xf32, #tpu.memory_space<vmem>>, vector<1x8xf32>,
      %154 = vector.shape_cast %77 : vector<16x1xi1> to vector<16x1xi1>
      %155 = vector.broadcast %154 : vector<16x1xi1> to vector<16x8xi1>
      %156 = vector.broadcast %cst_1 : f32 to vector<16x8xf32>
      %157 = arith.select %155, %117, %156 : vector<16x8xi1>, vector<16x8xf32>
      %cst_38 = arith.constant dense<0xFF800000> : vector<8xf32>
      %158 = vector.multi_reduction <maximumf>, %157, %cst_38 [0] : vector<16x8xf32> to vector<8xf32>
      %159 = vector.shape_cast %158 : vector<8xf32> to vector<1x8xf32>
      %160 = arith.andi %114, %78 : i1
      %161 = arith.select %160, %159, %2 : vector<1x8xf32>
      %c4 = arith.constant 4 : index
      %c0_39 = arith.constant 0 : index
      %162 = vector.load %arg4[%c4, %c0_39] : memref<49x8xf32, #tpu.memory_space<vmem>>, vector<1x8xf32>
      tpu.vector_store %arg4[%c4, %c0_39], %161 {strides = array<i32>} : memref<49x8xf32, #tpu.memory_space<vmem>>, vector<1x8xf32>,
      %163 = vector.shape_cast %91 : vector<16x1xi1> to vector<16x1xi1>
      %164 = vector.broadcast %163 : vector<16x1xi1> to vector<16x8xi1>
      %165 = vector.broadcast %cst_1 : f32 to vector<16x8xf32>
      %166 = arith.select %164, %117, %165 : vector<16x8xi1>, vector<16x8xf32>
      %cst_40 = arith.constant dense<0xFF800000> : vector<8xf32>
      %167 = vector.multi_reduction <maximumf>, %166, %cst_40 [0] : vector<16x8xf32> to vector<8xf32>
      %168 = vector.shape_cast %167 : vector<8xf32> to vector<1x8xf32>
      %169 = arith.andi %114, %92 : i1
      %170 = arith.select %169, %168, %2 : vector<1x8xf32>
      %c5 = arith.constant 5 : index
      %c0_41 = arith.constant 0 : index
      %171 = vector.load %arg4[%c5, %c0_41] : memref<49x8xf32, #tpu.memory_space<vmem>>, vector<1x8xf32>
      tpu.vector_store %arg4[%c5, %c0_41], %170 {strides = array<i32>} : memref<49x8xf32, #tpu.memory_space<vmem>>, vector<1x8xf32>,
      %172 = vector.shape_cast %105 : vector<16x1xi1> to vector<16x1xi1>
      %173 = vector.broadcast %172 : vector<16x1xi1> to vector<16x8xi1>
      %174 = vector.broadcast %cst_1 : f32 to vector<16x8xf32>
      %175 = arith.select %173, %117, %174 : vector<16x8xi1>, vector<16x8xf32>
      %cst_42 = arith.constant dense<0xFF800000> : vector<8xf32>
      %176 = vector.multi_reduction <maximumf>, %175, %cst_42 [0] : vector<16x8xf32> to vector<8xf32>
      %177 = vector.shape_cast %176 : vector<8xf32> to vector<1x8xf32>
      %178 = arith.andi %114, %106 : i1
      %179 = arith.select %178, %177, %2 : vector<1x8xf32>
      %c6 = arith.constant 6 : index
      %c0_43 = arith.constant 0 : index
      %180 = vector.load %arg4[%c6, %c0_43] : memref<49x8xf32, #tpu.memory_space<vmem>>, vector<1x8xf32>
      tpu.vector_store %arg4[%c6, %c0_43], %179 {strides = array<i32>} : memref<49x8xf32, #tpu.memory_space<vmem>>, vector<1x8xf32>,
      %c1_i32_44 = arith.constant 1 : i32
      %181 = arith.addi %8, %c1_i32_44 : i32
      %182 = arith.index_cast %181 : i32 to index
      %183 = memref.load %arg1[%182] : memref<3584xi32, #tpu.memory_space<smem>>
      %c7_i32_45 = arith.constant 7 : i32
      %184 = arith.addi %8, %c7_i32_45 : i32
      %c1_i32_46 = arith.constant 1 : i32
      %185 = arith.addi %184, %c1_i32_46 : i32
      %186 = arith.index_cast %185 : i32 to index
      %187 = memref.load %arg1[%186] : memref<3584xi32, #tpu.memory_space<smem>>
      %188 = arith.cmpi sgt, %187, %183 : i32
      %189 = arith.subi %187, %183 : i32
      %190 = arith.addi %183, %189 : i32
      %c1_i32_47 = arith.constant 1 : i32
      %191 = scf.for %arg6 = %183 to %190 step %c1_i32_47 iter_args(%arg7 = %1) -> (vector<16x8xf32>)  : i32 {
        %630 = arith.index_cast %arg6 : i32 to index
        %c0_156 = arith.constant 0 : index
        %c0_157 = arith.constant 0 : index
        %631 = vector.load %arg2[%630, %c0_156, %c0_157] : memref<16x16x8xf32, #tpu.memory_space<vmem>>, vector<1x16x8xf32>
        %632 = vector.shape_cast %631 : vector<1x16x8xf32> to vector<16x8xf32>
        %633 = arith.maximumf %arg7, %632 : vector<16x8xf32>
        scf.yield %633 : vector<16x8xf32>
      }
      %192 = vector.shape_cast %21 : vector<16x1xi1> to vector<16x1xi1>
      %193 = vector.broadcast %192 : vector<16x1xi1> to vector<16x8xi1>
      %194 = vector.broadcast %cst_1 : f32 to vector<16x8xf32>
      %195 = arith.select %193, %191, %194 : vector<16x8xi1>, vector<16x8xf32>
      %cst_48 = arith.constant dense<0xFF800000> : vector<8xf32>
      %196 = vector.multi_reduction <maximumf>, %195, %cst_48 [0] : vector<16x8xf32> to vector<8xf32>
      %197 = vector.shape_cast %196 : vector<8xf32> to vector<1x8xf32>
      %198 = arith.andi %188, %22 : i1
      %199 = arith.select %198, %197, %2 : vector<1x8xf32>
      %c7 = arith.constant 7 : index
      %c0_49 = arith.constant 0 : index
      %200 = vector.load %arg4[%c7, %c0_49] : memref<49x8xf32, #tpu.memory_space<vmem>>, vector<1x8xf32>
      tpu.vector_store %arg4[%c7, %c0_49], %199 {strides = array<i32>} : memref<49x8xf32, #tpu.memory_space<vmem>>, vector<1x8xf32>,
      %201 = vector.shape_cast %35 : vector<16x1xi1> to vector<16x1xi1>
      %202 = vector.broadcast %201 : vector<16x1xi1> to vector<16x8xi1>
      %203 = vector.broadcast %cst_1 : f32 to vector<16x8xf32>
      %204 = arith.select %202, %191, %203 : vector<16x8xi1>, vector<16x8xf32>
      %cst_50 = arith.constant dense<0xFF800000> : vector<8xf32>
      %205 = vector.multi_reduction <maximumf>, %204, %cst_50 [0] : vector<16x8xf32> to vector<8xf32>
      %206 = vector.shape_cast %205 : vector<8xf32> to vector<1x8xf32>
      %207 = arith.andi %188, %36 : i1
      %208 = arith.select %207, %206, %2 : vector<1x8xf32>
      %c8 = arith.constant 8 : index
      %c0_51 = arith.constant 0 : index
      %209 = vector.load %arg4[%c8, %c0_51] : memref<49x8xf32, #tpu.memory_space<vmem>>, vector<1x8xf32>
      tpu.vector_store %arg4[%c8, %c0_51], %208 {strides = array<i32>} : memref<49x8xf32, #tpu.memory_space<vmem>>, vector<1x8xf32>,
      %210 = vector.shape_cast %49 : vector<16x1xi1> to vector<16x1xi1>
      %211 = vector.broadcast %210 : vector<16x1xi1> to vector<16x8xi1>
      %212 = vector.broadcast %cst_1 : f32 to vector<16x8xf32>
      %213 = arith.select %211, %191, %212 : vector<16x8xi1>, vector<16x8xf32>
      %cst_52 = arith.constant dense<0xFF800000> : vector<8xf32>
      %214 = vector.multi_reduction <maximumf>, %213, %cst_52 [0] : vector<16x8xf32> to vector<8xf32>
      %215 = vector.shape_cast %214 : vector<8xf32> to vector<1x8xf32>
      %216 = arith.andi %188, %50 : i1
      %217 = arith.select %216, %215, %2 : vector<1x8xf32>
      %c9 = arith.constant 9 : index
      %c0_53 = arith.constant 0 : index
      %218 = vector.load %arg4[%c9, %c0_53] : memref<49x8xf32, #tpu.memory_space<vmem>>, vector<1x8xf32>
      tpu.vector_store %arg4[%c9, %c0_53], %217 {strides = array<i32>} : memref<49x8xf32, #tpu.memory_space<vmem>>, vector<1x8xf32>,
      %219 = vector.shape_cast %63 : vector<16x1xi1> to vector<16x1xi1>
      %220 = vector.broadcast %219 : vector<16x1xi1> to vector<16x8xi1>
      %221 = vector.broadcast %cst_1 : f32 to vector<16x8xf32>
      %222 = arith.select %220, %191, %221 : vector<16x8xi1>, vector<16x8xf32>
      %cst_54 = arith.constant dense<0xFF800000> : vector<8xf32>
      %223 = vector.multi_reduction <maximumf>, %222, %cst_54 [0] : vector<16x8xf32> to vector<8xf32>
      %224 = vector.shape_cast %223 : vector<8xf32> to vector<1x8xf32>
      %225 = arith.andi %188, %64 : i1
      %226 = arith.select %225, %224, %2 : vector<1x8xf32>
      %c10 = arith.constant 10 : index
      %c0_55 = arith.constant 0 : index
      %227 = vector.load %arg4[%c10, %c0_55] : memref<49x8xf32, #tpu.memory_space<vmem>>, vector<1x8xf32>
      tpu.vector_store %arg4[%c10, %c0_55], %226 {strides = array<i32>} : memref<49x8xf32, #tpu.memory_space<vmem>>, vector<1x8xf32>,
      %228 = vector.shape_cast %77 : vector<16x1xi1> to vector<16x1xi1>
      %229 = vector.broadcast %228 : vector<16x1xi1> to vector<16x8xi1>
      %230 = vector.broadcast %cst_1 : f32 to vector<16x8xf32>
      %231 = arith.select %229, %191, %230 : vector<16x8xi1>, vector<16x8xf32>
      %cst_56 = arith.constant dense<0xFF800000> : vector<8xf32>
      %232 = vector.multi_reduction <maximumf>, %231, %cst_56 [0] : vector<16x8xf32> to vector<8xf32>
      %233 = vector.shape_cast %232 : vector<8xf32> to vector<1x8xf32>
      %234 = arith.andi %188, %78 : i1
      %235 = arith.select %234, %233, %2 : vector<1x8xf32>
      %c11 = arith.constant 11 : index
      %c0_57 = arith.constant 0 : index
      %236 = vector.load %arg4[%c11, %c0_57] : memref<49x8xf32, #tpu.memory_space<vmem>>, vector<1x8xf32>
      tpu.vector_store %arg4[%c11, %c0_57], %235 {strides = array<i32>} : memref<49x8xf32, #tpu.memory_space<vmem>>, vector<1x8xf32>,
      %237 = vector.shape_cast %91 : vector<16x1xi1> to vector<16x1xi1>
      %238 = vector.broadcast %237 : vector<16x1xi1> to vector<16x8xi1>
      %239 = vector.broadcast %cst_1 : f32 to vector<16x8xf32>
      %240 = arith.select %238, %191, %239 : vector<16x8xi1>, vector<16x8xf32>
      %cst_58 = arith.constant dense<0xFF800000> : vector<8xf32>
      %241 = vector.multi_reduction <maximumf>, %240, %cst_58 [0] : vector<16x8xf32> to vector<8xf32>
      %242 = vector.shape_cast %241 : vector<8xf32> to vector<1x8xf32>
      %243 = arith.andi %188, %92 : i1
      %244 = arith.select %243, %242, %2 : vector<1x8xf32>
      %c12 = arith.constant 12 : index
      %c0_59 = arith.constant 0 : index
      %245 = vector.load %arg4[%c12, %c0_59] : memref<49x8xf32, #tpu.memory_space<vmem>>, vector<1x8xf32>
      tpu.vector_store %arg4[%c12, %c0_59], %244 {strides = array<i32>} : memref<49x8xf32, #tpu.memory_space<vmem>>, vector<1x8xf32>,
      %246 = vector.shape_cast %105 : vector<16x1xi1> to vector<16x1xi1>
      %247 = vector.broadcast %246 : vector<16x1xi1> to vector<16x8xi1>
      %248 = vector.broadcast %cst_1 : f32 to vector<16x8xf32>
      %249 = arith.select %247, %191, %248 : vector<16x8xi1>, vector<16x8xf32>
      %cst_60 = arith.constant dense<0xFF800000> : vector<8xf32>
      %250 = vector.multi_reduction <maximumf>, %249, %cst_60 [0] : vector<16x8xf32> to vector<8xf32>
      %251 = vector.shape_cast %250 : vector<8xf32> to vector<1x8xf32>
      %252 = arith.andi %188, %106 : i1
      %253 = arith.select %252, %251, %2 : vector<1x8xf32>
      %c13 = arith.constant 13 : index
      %c0_61 = arith.constant 0 : index
      %254 = vector.load %arg4[%c13, %c0_61] : memref<49x8xf32, #tpu.memory_space<vmem>>, vector<1x8xf32>
      tpu.vector_store %arg4[%c13, %c0_61], %253 {strides = array<i32>} : memref<49x8xf32, #tpu.memory_space<vmem>>, vector<1x8xf32>,
      %c2_i32_62 = arith.constant 2 : i32
      %255 = arith.addi %8, %c2_i32_62 : i32
      %256 = arith.index_cast %255 : i32 to index
      %257 = memref.load %arg1[%256] : memref<3584xi32, #tpu.memory_space<smem>>
      %c7_i32_63 = arith.constant 7 : i32
      %258 = arith.addi %8, %c7_i32_63 : i32
      %c2_i32_64 = arith.constant 2 : i32
      %259 = arith.addi %258, %c2_i32_64 : i32
      %260 = arith.index_cast %259 : i32 to index
      %261 = memref.load %arg1[%260] : memref<3584xi32, #tpu.memory_space<smem>>
      %262 = arith.cmpi sgt, %261, %257 : i32
      %263 = arith.subi %261, %257 : i32
      %264 = arith.addi %257, %263 : i32
      %c1_i32_65 = arith.constant 1 : i32
      %265 = scf.for %arg6 = %257 to %264 step %c1_i32_65 iter_args(%arg7 = %1) -> (vector<16x8xf32>)  : i32 {
        %630 = arith.index_cast %arg6 : i32 to index
        %c0_156 = arith.constant 0 : index
        %c0_157 = arith.constant 0 : index
        %631 = vector.load %arg2[%630, %c0_156, %c0_157] : memref<16x16x8xf32, #tpu.memory_space<vmem>>, vector<1x16x8xf32>
        %632 = vector.shape_cast %631 : vector<1x16x8xf32> to vector<16x8xf32>
        %633 = arith.maximumf %arg7, %632 : vector<16x8xf32>
        scf.yield %633 : vector<16x8xf32>
      }
      %266 = vector.shape_cast %21 : vector<16x1xi1> to vector<16x1xi1>
      %267 = vector.broadcast %266 : vector<16x1xi1> to vector<16x8xi1>
      %268 = vector.broadcast %cst_1 : f32 to vector<16x8xf32>
      %269 = arith.select %267, %265, %268 : vector<16x8xi1>, vector<16x8xf32>
      %cst_66 = arith.constant dense<0xFF800000> : vector<8xf32>
      %270 = vector.multi_reduction <maximumf>, %269, %cst_66 [0] : vector<16x8xf32> to vector<8xf32>
      %271 = vector.shape_cast %270 : vector<8xf32> to vector<1x8xf32>
      %272 = arith.andi %262, %22 : i1
      %273 = arith.select %272, %271, %2 : vector<1x8xf32>
      %c14 = arith.constant 14 : index
      %c0_67 = arith.constant 0 : index
      %274 = vector.load %arg4[%c14, %c0_67] : memref<49x8xf32, #tpu.memory_space<vmem>>, vector<1x8xf32>
      tpu.vector_store %arg4[%c14, %c0_67], %273 {strides = array<i32>} : memref<49x8xf32, #tpu.memory_space<vmem>>, vector<1x8xf32>,
      %275 = vector.shape_cast %35 : vector<16x1xi1> to vector<16x1xi1>
      %276 = vector.broadcast %275 : vector<16x1xi1> to vector<16x8xi1>
      %277 = vector.broadcast %cst_1 : f32 to vector<16x8xf32>
      %278 = arith.select %276, %265, %277 : vector<16x8xi1>, vector<16x8xf32>
      %cst_68 = arith.constant dense<0xFF800000> : vector<8xf32>
      %279 = vector.multi_reduction <maximumf>, %278, %cst_68 [0] : vector<16x8xf32> to vector<8xf32>
      %280 = vector.shape_cast %279 : vector<8xf32> to vector<1x8xf32>
      %281 = arith.andi %262, %36 : i1
      %282 = arith.select %281, %280, %2 : vector<1x8xf32>
      %c15 = arith.constant 15 : index
      %c0_69 = arith.constant 0 : index
      %283 = vector.load %arg4[%c15, %c0_69] : memref<49x8xf32, #tpu.memory_space<vmem>>, vector<1x8xf32>
      tpu.vector_store %arg4[%c15, %c0_69], %282 {strides = array<i32>} : memref<49x8xf32, #tpu.memory_space<vmem>>, vector<1x8xf32>,
      %284 = vector.shape_cast %49 : vector<16x1xi1> to vector<16x1xi1>
      %285 = vector.broadcast %284 : vector<16x1xi1> to vector<16x8xi1>
      %286 = vector.broadcast %cst_1 : f32 to vector<16x8xf32>
      %287 = arith.select %285, %265, %286 : vector<16x8xi1>, vector<16x8xf32>
      %cst_70 = arith.constant dense<0xFF800000> : vector<8xf32>
      %288 = vector.multi_reduction <maximumf>, %287, %cst_70 [0] : vector<16x8xf32> to vector<8xf32>
      %289 = vector.shape_cast %288 : vector<8xf32> to vector<1x8xf32>
      %290 = arith.andi %262, %50 : i1
      %291 = arith.select %290, %289, %2 : vector<1x8xf32>
      %c16 = arith.constant 16 : index
      %c0_71 = arith.constant 0 : index
      %292 = vector.load %arg4[%c16, %c0_71] : memref<49x8xf32, #tpu.memory_space<vmem>>, vector<1x8xf32>
      tpu.vector_store %arg4[%c16, %c0_71], %291 {strides = array<i32>} : memref<49x8xf32, #tpu.memory_space<vmem>>, vector<1x8xf32>,
      %293 = vector.shape_cast %63 : vector<16x1xi1> to vector<16x1xi1>
      %294 = vector.broadcast %293 : vector<16x1xi1> to vector<16x8xi1>
      %295 = vector.broadcast %cst_1 : f32 to vector<16x8xf32>
      %296 = arith.select %294, %265, %295 : vector<16x8xi1>, vector<16x8xf32>
      %cst_72 = arith.constant dense<0xFF800000> : vector<8xf32>
      %297 = vector.multi_reduction <maximumf>, %296, %cst_72 [0] : vector<16x8xf32> to vector<8xf32>
      %298 = vector.shape_cast %297 : vector<8xf32> to vector<1x8xf32>
      %299 = arith.andi %262, %64 : i1
      %300 = arith.select %299, %298, %2 : vector<1x8xf32>
      %c17 = arith.constant 17 : index
      %c0_73 = arith.constant 0 : index
      %301 = vector.load %arg4[%c17, %c0_73] : memref<49x8xf32, #tpu.memory_space<vmem>>, vector<1x8xf32>
      tpu.vector_store %arg4[%c17, %c0_73], %300 {strides = array<i32>} : memref<49x8xf32, #tpu.memory_space<vmem>>, vector<1x8xf32>,
      %302 = vector.shape_cast %77 : vector<16x1xi1> to vector<16x1xi1>
      %303 = vector.broadcast %302 : vector<16x1xi1> to vector<16x8xi1>
      %304 = vector.broadcast %cst_1 : f32 to vector<16x8xf32>
      %305 = arith.select %303, %265, %304 : vector<16x8xi1>, vector<16x8xf32>
      %cst_74 = arith.constant dense<0xFF800000> : vector<8xf32>
      %306 = vector.multi_reduction <maximumf>, %305, %cst_74 [0] : vector<16x8xf32> to vector<8xf32>
      %307 = vector.shape_cast %306 : vector<8xf32> to vector<1x8xf32>
      %308 = arith.andi %262, %78 : i1
      %309 = arith.select %308, %307, %2 : vector<1x8xf32>
      %c18 = arith.constant 18 : index
      %c0_75 = arith.constant 0 : index
      %310 = vector.load %arg4[%c18, %c0_75] : memref<49x8xf32, #tpu.memory_space<vmem>>, vector<1x8xf32>
      tpu.vector_store %arg4[%c18, %c0_75], %309 {strides = array<i32>} : memref<49x8xf32, #tpu.memory_space<vmem>>, vector<1x8xf32>,
      %311 = vector.shape_cast %91 : vector<16x1xi1> to vector<16x1xi1>
      %312 = vector.broadcast %311 : vector<16x1xi1> to vector<16x8xi1>
      %313 = vector.broadcast %cst_1 : f32 to vector<16x8xf32>
      %314 = arith.select %312, %265, %313 : vector<16x8xi1>, vector<16x8xf32>
      %cst_76 = arith.constant dense<0xFF800000> : vector<8xf32>
      %315 = vector.multi_reduction <maximumf>, %314, %cst_76 [0] : vector<16x8xf32> to vector<8xf32>
      %316 = vector.shape_cast %315 : vector<8xf32> to vector<1x8xf32>
      %317 = arith.andi %262, %92 : i1
      %318 = arith.select %317, %316, %2 : vector<1x8xf32>
      %c19 = arith.constant 19 : index
      %c0_77 = arith.constant 0 : index
      %319 = vector.load %arg4[%c19, %c0_77] : memref<49x8xf32, #tpu.memory_space<vmem>>, vector<1x8xf32>
      tpu.vector_store %arg4[%c19, %c0_77], %318 {strides = array<i32>} : memref<49x8xf32, #tpu.memory_space<vmem>>, vector<1x8xf32>,
      %320 = vector.shape_cast %105 : vector<16x1xi1> to vector<16x1xi1>
      %321 = vector.broadcast %320 : vector<16x1xi1> to vector<16x8xi1>
      %322 = vector.broadcast %cst_1 : f32 to vector<16x8xf32>
      %323 = arith.select %321, %265, %322 : vector<16x8xi1>, vector<16x8xf32>
      %cst_78 = arith.constant dense<0xFF800000> : vector<8xf32>
      %324 = vector.multi_reduction <maximumf>, %323, %cst_78 [0] : vector<16x8xf32> to vector<8xf32>
      %325 = vector.shape_cast %324 : vector<8xf32> to vector<1x8xf32>
      %326 = arith.andi %262, %106 : i1
      %327 = arith.select %326, %325, %2 : vector<1x8xf32>
      %c20 = arith.constant 20 : index
      %c0_79 = arith.constant 0 : index
      %328 = vector.load %arg4[%c20, %c0_79] : memref<49x8xf32, #tpu.memory_space<vmem>>, vector<1x8xf32>
      tpu.vector_store %arg4[%c20, %c0_79], %327 {strides = array<i32>} : memref<49x8xf32, #tpu.memory_space<vmem>>, vector<1x8xf32>,
      %c3_i32_80 = arith.constant 3 : i32
      %329 = arith.addi %8, %c3_i32_80 : i32
      %330 = arith.index_cast %329 : i32 to index
      %331 = memref.load %arg1[%330] : memref<3584xi32, #tpu.memory_space<smem>>
      %c7_i32_81 = arith.constant 7 : i32
      %332 = arith.addi %8, %c7_i32_81 : i32
      %c3_i32_82 = arith.constant 3 : i32
      %333 = arith.addi %332, %c3_i32_82 : i32
      %334 = arith.index_cast %333 : i32 to index
      %335 = memref.load %arg1[%334] : memref<3584xi32, #tpu.memory_space<smem>>
      %336 = arith.cmpi sgt, %335, %331 : i32
      %337 = arith.subi %335, %331 : i32
      %338 = arith.addi %331, %337 : i32
      %c1_i32_83 = arith.constant 1 : i32
      %339 = scf.for %arg6 = %331 to %338 step %c1_i32_83 iter_args(%arg7 = %1) -> (vector<16x8xf32>)  : i32 {
        %630 = arith.index_cast %arg6 : i32 to index
        %c0_156 = arith.constant 0 : index
        %c0_157 = arith.constant 0 : index
        %631 = vector.load %arg2[%630, %c0_156, %c0_157] : memref<16x16x8xf32, #tpu.memory_space<vmem>>, vector<1x16x8xf32>
        %632 = vector.shape_cast %631 : vector<1x16x8xf32> to vector<16x8xf32>
        %633 = arith.maximumf %arg7, %632 : vector<16x8xf32>
        scf.yield %633 : vector<16x8xf32>
      }
      %340 = vector.shape_cast %21 : vector<16x1xi1> to vector<16x1xi1>
      %341 = vector.broadcast %340 : vector<16x1xi1> to vector<16x8xi1>
      %342 = vector.broadcast %cst_1 : f32 to vector<16x8xf32>
      %343 = arith.select %341, %339, %342 : vector<16x8xi1>, vector<16x8xf32>
      %cst_84 = arith.constant dense<0xFF800000> : vector<8xf32>
      %344 = vector.multi_reduction <maximumf>, %343, %cst_84 [0] : vector<16x8xf32> to vector<8xf32>
      %345 = vector.shape_cast %344 : vector<8xf32> to vector<1x8xf32>
      %346 = arith.andi %336, %22 : i1
      %347 = arith.select %346, %345, %2 : vector<1x8xf32>
      %c21 = arith.constant 21 : index
      %c0_85 = arith.constant 0 : index
      %348 = vector.load %arg4[%c21, %c0_85] : memref<49x8xf32, #tpu.memory_space<vmem>>, vector<1x8xf32>
      tpu.vector_store %arg4[%c21, %c0_85], %347 {strides = array<i32>} : memref<49x8xf32, #tpu.memory_space<vmem>>, vector<1x8xf32>,
      %349 = vector.shape_cast %35 : vector<16x1xi1> to vector<16x1xi1>
      %350 = vector.broadcast %349 : vector<16x1xi1> to vector<16x8xi1>
      %351 = vector.broadcast %cst_1 : f32 to vector<16x8xf32>
      %352 = arith.select %350, %339, %351 : vector<16x8xi1>, vector<16x8xf32>
      %cst_86 = arith.constant dense<0xFF800000> : vector<8xf32>
      %353 = vector.multi_reduction <maximumf>, %352, %cst_86 [0] : vector<16x8xf32> to vector<8xf32>
      %354 = vector.shape_cast %353 : vector<8xf32> to vector<1x8xf32>
      %355 = arith.andi %336, %36 : i1
      %356 = arith.select %355, %354, %2 : vector<1x8xf32>
      %c22 = arith.constant 22 : index
      %c0_87 = arith.constant 0 : index
      %357 = vector.load %arg4[%c22, %c0_87] : memref<49x8xf32, #tpu.memory_space<vmem>>, vector<1x8xf32>
      tpu.vector_store %arg4[%c22, %c0_87], %356 {strides = array<i32>} : memref<49x8xf32, #tpu.memory_space<vmem>>, vector<1x8xf32>,
      %358 = vector.shape_cast %49 : vector<16x1xi1> to vector<16x1xi1>
      %359 = vector.broadcast %358 : vector<16x1xi1> to vector<16x8xi1>
      %360 = vector.broadcast %cst_1 : f32 to vector<16x8xf32>
      %361 = arith.select %359, %339, %360 : vector<16x8xi1>, vector<16x8xf32>
      %cst_88 = arith.constant dense<0xFF800000> : vector<8xf32>
      %362 = vector.multi_reduction <maximumf>, %361, %cst_88 [0] : vector<16x8xf32> to vector<8xf32>
      %363 = vector.shape_cast %362 : vector<8xf32> to vector<1x8xf32>
      %364 = arith.andi %336, %50 : i1
      %365 = arith.select %364, %363, %2 : vector<1x8xf32>
      %c23 = arith.constant 23 : index
      %c0_89 = arith.constant 0 : index
      %366 = vector.load %arg4[%c23, %c0_89] : memref<49x8xf32, #tpu.memory_space<vmem>>, vector<1x8xf32>
      tpu.vector_store %arg4[%c23, %c0_89], %365 {strides = array<i32>} : memref<49x8xf32, #tpu.memory_space<vmem>>, vector<1x8xf32>,
      %367 = vector.shape_cast %63 : vector<16x1xi1> to vector<16x1xi1>
      %368 = vector.broadcast %367 : vector<16x1xi1> to vector<16x8xi1>
      %369 = vector.broadcast %cst_1 : f32 to vector<16x8xf32>
      %370 = arith.select %368, %339, %369 : vector<16x8xi1>, vector<16x8xf32>
      %cst_90 = arith.constant dense<0xFF800000> : vector<8xf32>
      %371 = vector.multi_reduction <maximumf>, %370, %cst_90 [0] : vector<16x8xf32> to vector<8xf32>
      %372 = vector.shape_cast %371 : vector<8xf32> to vector<1x8xf32>
      %373 = arith.andi %336, %64 : i1
      %374 = arith.select %373, %372, %2 : vector<1x8xf32>
      %c24 = arith.constant 24 : index
      %c0_91 = arith.constant 0 : index
      %375 = vector.load %arg4[%c24, %c0_91] : memref<49x8xf32, #tpu.memory_space<vmem>>, vector<1x8xf32>
      tpu.vector_store %arg4[%c24, %c0_91], %374 {strides = array<i32>} : memref<49x8xf32, #tpu.memory_space<vmem>>, vector<1x8xf32>,
      %376 = vector.shape_cast %77 : vector<16x1xi1> to vector<16x1xi1>
      %377 = vector.broadcast %376 : vector<16x1xi1> to vector<16x8xi1>
      %378 = vector.broadcast %cst_1 : f32 to vector<16x8xf32>
      %379 = arith.select %377, %339, %378 : vector<16x8xi1>, vector<16x8xf32>
      %cst_92 = arith.constant dense<0xFF800000> : vector<8xf32>
      %380 = vector.multi_reduction <maximumf>, %379, %cst_92 [0] : vector<16x8xf32> to vector<8xf32>
      %381 = vector.shape_cast %380 : vector<8xf32> to vector<1x8xf32>
      %382 = arith.andi %336, %78 : i1
      %383 = arith.select %382, %381, %2 : vector<1x8xf32>
      %c25 = arith.constant 25 : index
      %c0_93 = arith.constant 0 : index
      %384 = vector.load %arg4[%c25, %c0_93] : memref<49x8xf32, #tpu.memory_space<vmem>>, vector<1x8xf32>
      tpu.vector_store %arg4[%c25, %c0_93], %383 {strides = array<i32>} : memref<49x8xf32, #tpu.memory_space<vmem>>, vector<1x8xf32>,
      %385 = vector.shape_cast %91 : vector<16x1xi1> to vector<16x1xi1>
      %386 = vector.broadcast %385 : vector<16x1xi1> to vector<16x8xi1>
      %387 = vector.broadcast %cst_1 : f32 to vector<16x8xf32>
      %388 = arith.select %386, %339, %387 : vector<16x8xi1>, vector<16x8xf32>
      %cst_94 = arith.constant dense<0xFF800000> : vector<8xf32>
      %389 = vector.multi_reduction <maximumf>, %388, %cst_94 [0] : vector<16x8xf32> to vector<8xf32>
      %390 = vector.shape_cast %389 : vector<8xf32> to vector<1x8xf32>
      %391 = arith.andi %336, %92 : i1
      %392 = arith.select %391, %390, %2 : vector<1x8xf32>
      %c26 = arith.constant 26 : index
      %c0_95 = arith.constant 0 : index
      %393 = vector.load %arg4[%c26, %c0_95] : memref<49x8xf32, #tpu.memory_space<vmem>>, vector<1x8xf32>
      tpu.vector_store %arg4[%c26, %c0_95], %392 {strides = array<i32>} : memref<49x8xf32, #tpu.memory_space<vmem>>, vector<1x8xf32>,
      %394 = vector.shape_cast %105 : vector<16x1xi1> to vector<16x1xi1>
      %395 = vector.broadcast %394 : vector<16x1xi1> to vector<16x8xi1>
      %396 = vector.broadcast %cst_1 : f32 to vector<16x8xf32>
      %397 = arith.select %395, %339, %396 : vector<16x8xi1>, vector<16x8xf32>
      %cst_96 = arith.constant dense<0xFF800000> : vector<8xf32>
      %398 = vector.multi_reduction <maximumf>, %397, %cst_96 [0] : vector<16x8xf32> to vector<8xf32>
      %399 = vector.shape_cast %398 : vector<8xf32> to vector<1x8xf32>
      %400 = arith.andi %336, %106 : i1
      %401 = arith.select %400, %399, %2 : vector<1x8xf32>
      %c27 = arith.constant 27 : index
      %c0_97 = arith.constant 0 : index
      %402 = vector.load %arg4[%c27, %c0_97] : memref<49x8xf32, #tpu.memory_space<vmem>>, vector<1x8xf32>
      tpu.vector_store %arg4[%c27, %c0_97], %401 {strides = array<i32>} : memref<49x8xf32, #tpu.memory_space<vmem>>, vector<1x8xf32>,
      %c4_i32_98 = arith.constant 4 : i32
      %403 = arith.addi %8, %c4_i32_98 : i32
      %404 = arith.index_cast %403 : i32 to index
      %405 = memref.load %arg1[%404] : memref<3584xi32, #tpu.memory_space<smem>>
      %c7_i32_99 = arith.constant 7 : i32
      %406 = arith.addi %8, %c7_i32_99 : i32
      %c4_i32_100 = arith.constant 4 : i32
      %407 = arith.addi %406, %c4_i32_100 : i32
      %408 = arith.index_cast %407 : i32 to index
      %409 = memref.load %arg1[%408] : memref<3584xi32, #tpu.memory_space<smem>>
      %410 = arith.cmpi sgt, %409, %405 : i32
      %411 = arith.subi %409, %405 : i32
      %412 = arith.addi %405, %411 : i32
      %c1_i32_101 = arith.constant 1 : i32
      %413 = scf.for %arg6 = %405 to %412 step %c1_i32_101 iter_args(%arg7 = %1) -> (vector<16x8xf32>)  : i32 {
        %630 = arith.index_cast %arg6 : i32 to index
        %c0_156 = arith.constant 0 : index
        %c0_157 = arith.constant 0 : index
        %631 = vector.load %arg2[%630, %c0_156, %c0_157] : memref<16x16x8xf32, #tpu.memory_space<vmem>>, vector<1x16x8xf32>
        %632 = vector.shape_cast %631 : vector<1x16x8xf32> to vector<16x8xf32>
        %633 = arith.maximumf %arg7, %632 : vector<16x8xf32>
        scf.yield %633 : vector<16x8xf32>
      }
      %414 = vector.shape_cast %21 : vector<16x1xi1> to vector<16x1xi1>
      %415 = vector.broadcast %414 : vector<16x1xi1> to vector<16x8xi1>
      %416 = vector.broadcast %cst_1 : f32 to vector<16x8xf32>
      %417 = arith.select %415, %413, %416 : vector<16x8xi1>, vector<16x8xf32>
      %cst_102 = arith.constant dense<0xFF800000> : vector<8xf32>
      %418 = vector.multi_reduction <maximumf>, %417, %cst_102 [0] : vector<16x8xf32> to vector<8xf32>
      %419 = vector.shape_cast %418 : vector<8xf32> to vector<1x8xf32>
      %420 = arith.andi %410, %22 : i1
      %421 = arith.select %420, %419, %2 : vector<1x8xf32>
      %c28 = arith.constant 28 : index
      %c0_103 = arith.constant 0 : index
      %422 = vector.load %arg4[%c28, %c0_103] : memref<49x8xf32, #tpu.memory_space<vmem>>, vector<1x8xf32>
      tpu.vector_store %arg4[%c28, %c0_103], %421 {strides = array<i32>} : memref<49x8xf32, #tpu.memory_space<vmem>>, vector<1x8xf32>,
      %423 = vector.shape_cast %35 : vector<16x1xi1> to vector<16x1xi1>
      %424 = vector.broadcast %423 : vector<16x1xi1> to vector<16x8xi1>
      %425 = vector.broadcast %cst_1 : f32 to vector<16x8xf32>
      %426 = arith.select %424, %413, %425 : vector<16x8xi1>, vector<16x8xf32>
      %cst_104 = arith.constant dense<0xFF800000> : vector<8xf32>
      %427 = vector.multi_reduction <maximumf>, %426, %cst_104 [0] : vector<16x8xf32> to vector<8xf32>
      %428 = vector.shape_cast %427 : vector<8xf32> to vector<1x8xf32>
      %429 = arith.andi %410, %36 : i1
      %430 = arith.select %429, %428, %2 : vector<1x8xf32>
      %c29 = arith.constant 29 : index
      %c0_105 = arith.constant 0 : index
      %431 = vector.load %arg4[%c29, %c0_105] : memref<49x8xf32, #tpu.memory_space<vmem>>, vector<1x8xf32>
      tpu.vector_store %arg4[%c29, %c0_105], %430 {strides = array<i32>} : memref<49x8xf32, #tpu.memory_space<vmem>>, vector<1x8xf32>,
      %432 = vector.shape_cast %49 : vector<16x1xi1> to vector<16x1xi1>
      %433 = vector.broadcast %432 : vector<16x1xi1> to vector<16x8xi1>
      %434 = vector.broadcast %cst_1 : f32 to vector<16x8xf32>
      %435 = arith.select %433, %413, %434 : vector<16x8xi1>, vector<16x8xf32>
      %cst_106 = arith.constant dense<0xFF800000> : vector<8xf32>
      %436 = vector.multi_reduction <maximumf>, %435, %cst_106 [0] : vector<16x8xf32> to vector<8xf32>
      %437 = vector.shape_cast %436 : vector<8xf32> to vector<1x8xf32>
      %438 = arith.andi %410, %50 : i1
      %439 = arith.select %438, %437, %2 : vector<1x8xf32>
      %c30 = arith.constant 30 : index
      %c0_107 = arith.constant 0 : index
      %440 = vector.load %arg4[%c30, %c0_107] : memref<49x8xf32, #tpu.memory_space<vmem>>, vector<1x8xf32>
      tpu.vector_store %arg4[%c30, %c0_107], %439 {strides = array<i32>} : memref<49x8xf32, #tpu.memory_space<vmem>>, vector<1x8xf32>,
      %441 = vector.shape_cast %63 : vector<16x1xi1> to vector<16x1xi1>
      %442 = vector.broadcast %441 : vector<16x1xi1> to vector<16x8xi1>
      %443 = vector.broadcast %cst_1 : f32 to vector<16x8xf32>
      %444 = arith.select %442, %413, %443 : vector<16x8xi1>, vector<16x8xf32>
      %cst_108 = arith.constant dense<0xFF800000> : vector<8xf32>
      %445 = vector.multi_reduction <maximumf>, %444, %cst_108 [0] : vector<16x8xf32> to vector<8xf32>
      %446 = vector.shape_cast %445 : vector<8xf32> to vector<1x8xf32>
      %447 = arith.andi %410, %64 : i1
      %448 = arith.select %447, %446, %2 : vector<1x8xf32>
      %c31 = arith.constant 31 : index
      %c0_109 = arith.constant 0 : index
      %449 = vector.load %arg4[%c31, %c0_109] : memref<49x8xf32, #tpu.memory_space<vmem>>, vector<1x8xf32>
      tpu.vector_store %arg4[%c31, %c0_109], %448 {strides = array<i32>} : memref<49x8xf32, #tpu.memory_space<vmem>>, vector<1x8xf32>,
      %450 = vector.shape_cast %77 : vector<16x1xi1> to vector<16x1xi1>
      %451 = vector.broadcast %450 : vector<16x1xi1> to vector<16x8xi1>
      %452 = vector.broadcast %cst_1 : f32 to vector<16x8xf32>
      %453 = arith.select %451, %413, %452 : vector<16x8xi1>, vector<16x8xf32>
      %cst_110 = arith.constant dense<0xFF800000> : vector<8xf32>
      %454 = vector.multi_reduction <maximumf>, %453, %cst_110 [0] : vector<16x8xf32> to vector<8xf32>
      %455 = vector.shape_cast %454 : vector<8xf32> to vector<1x8xf32>
      %456 = arith.andi %410, %78 : i1
      %457 = arith.select %456, %455, %2 : vector<1x8xf32>
      %c32 = arith.constant 32 : index
      %c0_111 = arith.constant 0 : index
      %458 = vector.load %arg4[%c32, %c0_111] : memref<49x8xf32, #tpu.memory_space<vmem>>, vector<1x8xf32>
      tpu.vector_store %arg4[%c32, %c0_111], %457 {strides = array<i32>} : memref<49x8xf32, #tpu.memory_space<vmem>>, vector<1x8xf32>,
      %459 = vector.shape_cast %91 : vector<16x1xi1> to vector<16x1xi1>
      %460 = vector.broadcast %459 : vector<16x1xi1> to vector<16x8xi1>
      %461 = vector.broadcast %cst_1 : f32 to vector<16x8xf32>
      %462 = arith.select %460, %413, %461 : vector<16x8xi1>, vector<16x8xf32>
      %cst_112 = arith.constant dense<0xFF800000> : vector<8xf32>
      %463 = vector.multi_reduction <maximumf>, %462, %cst_112 [0] : vector<16x8xf32> to vector<8xf32>
      %464 = vector.shape_cast %463 : vector<8xf32> to vector<1x8xf32>
      %465 = arith.andi %410, %92 : i1
      %466 = arith.select %465, %464, %2 : vector<1x8xf32>
      %c33 = arith.constant 33 : index
      %c0_113 = arith.constant 0 : index
      %467 = vector.load %arg4[%c33, %c0_113] : memref<49x8xf32, #tpu.memory_space<vmem>>, vector<1x8xf32>
      tpu.vector_store %arg4[%c33, %c0_113], %466 {strides = array<i32>} : memref<49x8xf32, #tpu.memory_space<vmem>>, vector<1x8xf32>,
      %468 = vector.shape_cast %105 : vector<16x1xi1> to vector<16x1xi1>
      %469 = vector.broadcast %468 : vector<16x1xi1> to vector<16x8xi1>
      %470 = vector.broadcast %cst_1 : f32 to vector<16x8xf32>
      %471 = arith.select %469, %413, %470 : vector<16x8xi1>, vector<16x8xf32>
      %cst_114 = arith.constant dense<0xFF800000> : vector<8xf32>
      %472 = vector.multi_reduction <maximumf>, %471, %cst_114 [0] : vector<16x8xf32> to vector<8xf32>
      %473 = vector.shape_cast %472 : vector<8xf32> to vector<1x8xf32>
      %474 = arith.andi %410, %106 : i1
      %475 = arith.select %474, %473, %2 : vector<1x8xf32>
      %c34 = arith.constant 34 : index
      %c0_115 = arith.constant 0 : index
      %476 = vector.load %arg4[%c34, %c0_115] : memref<49x8xf32, #tpu.memory_space<vmem>>, vector<1x8xf32>
      tpu.vector_store %arg4[%c34, %c0_115], %475 {strides = array<i32>} : memref<49x8xf32, #tpu.memory_space<vmem>>, vector<1x8xf32>,
      %c5_i32_116 = arith.constant 5 : i32
      %477 = arith.addi %8, %c5_i32_116 : i32
      %478 = arith.index_cast %477 : i32 to index
      %479 = memref.load %arg1[%478] : memref<3584xi32, #tpu.memory_space<smem>>
      %c7_i32_117 = arith.constant 7 : i32
      %480 = arith.addi %8, %c7_i32_117 : i32
      %c5_i32_118 = arith.constant 5 : i32
      %481 = arith.addi %480, %c5_i32_118 : i32
      %482 = arith.index_cast %481 : i32 to index
      %483 = memref.load %arg1[%482] : memref<3584xi32, #tpu.memory_space<smem>>
      %484 = arith.cmpi sgt, %483, %479 : i32
      %485 = arith.subi %483, %479 : i32
      %486 = arith.addi %479, %485 : i32
      %c1_i32_119 = arith.constant 1 : i32
      %487 = scf.for %arg6 = %479 to %486 step %c1_i32_119 iter_args(%arg7 = %1) -> (vector<16x8xf32>)  : i32 {
        %630 = arith.index_cast %arg6 : i32 to index
        %c0_156 = arith.constant 0 : index
        %c0_157 = arith.constant 0 : index
        %631 = vector.load %arg2[%630, %c0_156, %c0_157] : memref<16x16x8xf32, #tpu.memory_space<vmem>>, vector<1x16x8xf32>
        %632 = vector.shape_cast %631 : vector<1x16x8xf32> to vector<16x8xf32>
        %633 = arith.maximumf %arg7, %632 : vector<16x8xf32>
        scf.yield %633 : vector<16x8xf32>
      }
      %488 = vector.shape_cast %21 : vector<16x1xi1> to vector<16x1xi1>
      %489 = vector.broadcast %488 : vector<16x1xi1> to vector<16x8xi1>
      %490 = vector.broadcast %cst_1 : f32 to vector<16x8xf32>
      %491 = arith.select %489, %487, %490 : vector<16x8xi1>, vector<16x8xf32>
      %cst_120 = arith.constant dense<0xFF800000> : vector<8xf32>
      %492 = vector.multi_reduction <maximumf>, %491, %cst_120 [0] : vector<16x8xf32> to vector<8xf32>
      %493 = vector.shape_cast %492 : vector<8xf32> to vector<1x8xf32>
      %494 = arith.andi %484, %22 : i1
      %495 = arith.select %494, %493, %2 : vector<1x8xf32>
      %c35 = arith.constant 35 : index
      %c0_121 = arith.constant 0 : index
      %496 = vector.load %arg4[%c35, %c0_121] : memref<49x8xf32, #tpu.memory_space<vmem>>, vector<1x8xf32>
      tpu.vector_store %arg4[%c35, %c0_121], %495 {strides = array<i32>} : memref<49x8xf32, #tpu.memory_space<vmem>>, vector<1x8xf32>,
      %497 = vector.shape_cast %35 : vector<16x1xi1> to vector<16x1xi1>
      %498 = vector.broadcast %497 : vector<16x1xi1> to vector<16x8xi1>
      %499 = vector.broadcast %cst_1 : f32 to vector<16x8xf32>
      %500 = arith.select %498, %487, %499 : vector<16x8xi1>, vector<16x8xf32>
      %cst_122 = arith.constant dense<0xFF800000> : vector<8xf32>
      %501 = vector.multi_reduction <maximumf>, %500, %cst_122 [0] : vector<16x8xf32> to vector<8xf32>
      %502 = vector.shape_cast %501 : vector<8xf32> to vector<1x8xf32>
      %503 = arith.andi %484, %36 : i1
      %504 = arith.select %503, %502, %2 : vector<1x8xf32>
      %c36 = arith.constant 36 : index
      %c0_123 = arith.constant 0 : index
      %505 = vector.load %arg4[%c36, %c0_123] : memref<49x8xf32, #tpu.memory_space<vmem>>, vector<1x8xf32>
      tpu.vector_store %arg4[%c36, %c0_123], %504 {strides = array<i32>} : memref<49x8xf32, #tpu.memory_space<vmem>>, vector<1x8xf32>,
      %506 = vector.shape_cast %49 : vector<16x1xi1> to vector<16x1xi1>
      %507 = vector.broadcast %506 : vector<16x1xi1> to vector<16x8xi1>
      %508 = vector.broadcast %cst_1 : f32 to vector<16x8xf32>
      %509 = arith.select %507, %487, %508 : vector<16x8xi1>, vector<16x8xf32>
      %cst_124 = arith.constant dense<0xFF800000> : vector<8xf32>
      %510 = vector.multi_reduction <maximumf>, %509, %cst_124 [0] : vector<16x8xf32> to vector<8xf32>
      %511 = vector.shape_cast %510 : vector<8xf32> to vector<1x8xf32>
      %512 = arith.andi %484, %50 : i1
      %513 = arith.select %512, %511, %2 : vector<1x8xf32>
      %c37 = arith.constant 37 : index
      %c0_125 = arith.constant 0 : index
      %514 = vector.load %arg4[%c37, %c0_125] : memref<49x8xf32, #tpu.memory_space<vmem>>, vector<1x8xf32>
      tpu.vector_store %arg4[%c37, %c0_125], %513 {strides = array<i32>} : memref<49x8xf32, #tpu.memory_space<vmem>>, vector<1x8xf32>,
      %515 = vector.shape_cast %63 : vector<16x1xi1> to vector<16x1xi1>
      %516 = vector.broadcast %515 : vector<16x1xi1> to vector<16x8xi1>
      %517 = vector.broadcast %cst_1 : f32 to vector<16x8xf32>
      %518 = arith.select %516, %487, %517 : vector<16x8xi1>, vector<16x8xf32>
      %cst_126 = arith.constant dense<0xFF800000> : vector<8xf32>
      %519 = vector.multi_reduction <maximumf>, %518, %cst_126 [0] : vector<16x8xf32> to vector<8xf32>
      %520 = vector.shape_cast %519 : vector<8xf32> to vector<1x8xf32>
      %521 = arith.andi %484, %64 : i1
      %522 = arith.select %521, %520, %2 : vector<1x8xf32>
      %c38 = arith.constant 38 : index
      %c0_127 = arith.constant 0 : index
      %523 = vector.load %arg4[%c38, %c0_127] : memref<49x8xf32, #tpu.memory_space<vmem>>, vector<1x8xf32>
      tpu.vector_store %arg4[%c38, %c0_127], %522 {strides = array<i32>} : memref<49x8xf32, #tpu.memory_space<vmem>>, vector<1x8xf32>,
      %524 = vector.shape_cast %77 : vector<16x1xi1> to vector<16x1xi1>
      %525 = vector.broadcast %524 : vector<16x1xi1> to vector<16x8xi1>
      %526 = vector.broadcast %cst_1 : f32 to vector<16x8xf32>
      %527 = arith.select %525, %487, %526 : vector<16x8xi1>, vector<16x8xf32>
      %cst_128 = arith.constant dense<0xFF800000> : vector<8xf32>
      %528 = vector.multi_reduction <maximumf>, %527, %cst_128 [0] : vector<16x8xf32> to vector<8xf32>
      %529 = vector.shape_cast %528 : vector<8xf32> to vector<1x8xf32>
      %530 = arith.andi %484, %78 : i1
      %531 = arith.select %530, %529, %2 : vector<1x8xf32>
      %c39 = arith.constant 39 : index
      %c0_129 = arith.constant 0 : index
      %532 = vector.load %arg4[%c39, %c0_129] : memref<49x8xf32, #tpu.memory_space<vmem>>, vector<1x8xf32>
      tpu.vector_store %arg4[%c39, %c0_129], %531 {strides = array<i32>} : memref<49x8xf32, #tpu.memory_space<vmem>>, vector<1x8xf32>,
      %533 = vector.shape_cast %91 : vector<16x1xi1> to vector<16x1xi1>
      %534 = vector.broadcast %533 : vector<16x1xi1> to vector<16x8xi1>
      %535 = vector.broadcast %cst_1 : f32 to vector<16x8xf32>
      %536 = arith.select %534, %487, %535 : vector<16x8xi1>, vector<16x8xf32>
      %cst_130 = arith.constant dense<0xFF800000> : vector<8xf32>
      %537 = vector.multi_reduction <maximumf>, %536, %cst_130 [0] : vector<16x8xf32> to vector<8xf32>
      %538 = vector.shape_cast %537 : vector<8xf32> to vector<1x8xf32>
      %539 = arith.andi %484, %92 : i1
      %540 = arith.select %539, %538, %2 : vector<1x8xf32>
      %c40 = arith.constant 40 : index
      %c0_131 = arith.constant 0 : index
      %541 = vector.load %arg4[%c40, %c0_131] : memref<49x8xf32, #tpu.memory_space<vmem>>, vector<1x8xf32>
      tpu.vector_store %arg4[%c40, %c0_131], %540 {strides = array<i32>} : memref<49x8xf32, #tpu.memory_space<vmem>>, vector<1x8xf32>,
      %542 = vector.shape_cast %105 : vector<16x1xi1> to vector<16x1xi1>
      %543 = vector.broadcast %542 : vector<16x1xi1> to vector<16x8xi1>
      %544 = vector.broadcast %cst_1 : f32 to vector<16x8xf32>
      %545 = arith.select %543, %487, %544 : vector<16x8xi1>, vector<16x8xf32>
      %cst_132 = arith.constant dense<0xFF800000> : vector<8xf32>
      %546 = vector.multi_reduction <maximumf>, %545, %cst_132 [0] : vector<16x8xf32> to vector<8xf32>
      %547 = vector.shape_cast %546 : vector<8xf32> to vector<1x8xf32>
      %548 = arith.andi %484, %106 : i1
      %549 = arith.select %548, %547, %2 : vector<1x8xf32>
      %c41 = arith.constant 41 : index
      %c0_133 = arith.constant 0 : index
      %550 = vector.load %arg4[%c41, %c0_133] : memref<49x8xf32, #tpu.memory_space<vmem>>, vector<1x8xf32>
      tpu.vector_store %arg4[%c41, %c0_133], %549 {strides = array<i32>} : memref<49x8xf32, #tpu.memory_space<vmem>>, vector<1x8xf32>,
      %c6_i32_134 = arith.constant 6 : i32
      %551 = arith.addi %8, %c6_i32_134 : i32
      %552 = arith.index_cast %551 : i32 to index
      %553 = memref.load %arg1[%552] : memref<3584xi32, #tpu.memory_space<smem>>
      %c7_i32_135 = arith.constant 7 : i32
      %554 = arith.addi %8, %c7_i32_135 : i32
      %c6_i32_136 = arith.constant 6 : i32
      %555 = arith.addi %554, %c6_i32_136 : i32
      %556 = arith.index_cast %555 : i32 to index
      %557 = memref.load %arg1[%556] : memref<3584xi32, #tpu.memory_space<smem>>
      %558 = arith.cmpi sgt, %557, %553 : i32
      %559 = arith.subi %557, %553 : i32
      %560 = arith.addi %553, %559 : i32
      %c1_i32_137 = arith.constant 1 : i32
      %561 = scf.for %arg6 = %553 to %560 step %c1_i32_137 iter_args(%arg7 = %1) -> (vector<16x8xf32>)  : i32 {
        %630 = arith.index_cast %arg6 : i32 to index
        %c0_156 = arith.constant 0 : index
        %c0_157 = arith.constant 0 : index
        %631 = vector.load %arg2[%630, %c0_156, %c0_157] : memref<16x16x8xf32, #tpu.memory_space<vmem>>, vector<1x16x8xf32>
        %632 = vector.shape_cast %631 : vector<1x16x8xf32> to vector<16x8xf32>
        %633 = arith.maximumf %arg7, %632 : vector<16x8xf32>
        scf.yield %633 : vector<16x8xf32>
      }
      %562 = vector.shape_cast %21 : vector<16x1xi1> to vector<16x1xi1>
      %563 = vector.broadcast %562 : vector<16x1xi1> to vector<16x8xi1>
      %564 = vector.broadcast %cst_1 : f32 to vector<16x8xf32>
      %565 = arith.select %563, %561, %564 : vector<16x8xi1>, vector<16x8xf32>
      %cst_138 = arith.constant dense<0xFF800000> : vector<8xf32>
      %566 = vector.multi_reduction <maximumf>, %565, %cst_138 [0] : vector<16x8xf32> to vector<8xf32>
      %567 = vector.shape_cast %566 : vector<8xf32> to vector<1x8xf32>
      %568 = arith.andi %558, %22 : i1
      %569 = arith.select %568, %567, %2 : vector<1x8xf32>
      %c42 = arith.constant 42 : index
      %c0_139 = arith.constant 0 : index
      %570 = vector.load %arg4[%c42, %c0_139] : memref<49x8xf32, #tpu.memory_space<vmem>>, vector<1x8xf32>
      tpu.vector_store %arg4[%c42, %c0_139], %569 {strides = array<i32>} : memref<49x8xf32, #tpu.memory_space<vmem>>, vector<1x8xf32>,
      %571 = vector.shape_cast %35 : vector<16x1xi1> to vector<16x1xi1>
      %572 = vector.broadcast %571 : vector<16x1xi1> to vector<16x8xi1>
      %573 = vector.broadcast %cst_1 : f32 to vector<16x8xf32>
      %574 = arith.select %572, %561, %573 : vector<16x8xi1>, vector<16x8xf32>
      %cst_140 = arith.constant dense<0xFF800000> : vector<8xf32>
      %575 = vector.multi_reduction <maximumf>, %574, %cst_140 [0] : vector<16x8xf32> to vector<8xf32>
      %576 = vector.shape_cast %575 : vector<8xf32> to vector<1x8xf32>
      %577 = arith.andi %558, %36 : i1
      %578 = arith.select %577, %576, %2 : vector<1x8xf32>
      %c43 = arith.constant 43 : index
      %c0_141 = arith.constant 0 : index
      %579 = vector.load %arg4[%c43, %c0_141] : memref<49x8xf32, #tpu.memory_space<vmem>>, vector<1x8xf32>
      tpu.vector_store %arg4[%c43, %c0_141], %578 {strides = array<i32>} : memref<49x8xf32, #tpu.memory_space<vmem>>, vector<1x8xf32>,
      %580 = vector.shape_cast %49 : vector<16x1xi1> to vector<16x1xi1>
      %581 = vector.broadcast %580 : vector<16x1xi1> to vector<16x8xi1>
      %582 = vector.broadcast %cst_1 : f32 to vector<16x8xf32>
      %583 = arith.select %581, %561, %582 : vector<16x8xi1>, vector<16x8xf32>
      %cst_142 = arith.constant dense<0xFF800000> : vector<8xf32>
      %584 = vector.multi_reduction <maximumf>, %583, %cst_142 [0] : vector<16x8xf32> to vector<8xf32>
      %585 = vector.shape_cast %584 : vector<8xf32> to vector<1x8xf32>
      %586 = arith.andi %558, %50 : i1
      %587 = arith.select %586, %585, %2 : vector<1x8xf32>
      %c44 = arith.constant 44 : index
      %c0_143 = arith.constant 0 : index
      %588 = vector.load %arg4[%c44, %c0_143] : memref<49x8xf32, #tpu.memory_space<vmem>>, vector<1x8xf32>
      tpu.vector_store %arg4[%c44, %c0_143], %587 {strides = array<i32>} : memref<49x8xf32, #tpu.memory_space<vmem>>, vector<1x8xf32>,
      %589 = vector.shape_cast %63 : vector<16x1xi1> to vector<16x1xi1>
      %590 = vector.broadcast %589 : vector<16x1xi1> to vector<16x8xi1>
      %591 = vector.broadcast %cst_1 : f32 to vector<16x8xf32>
      %592 = arith.select %590, %561, %591 : vector<16x8xi1>, vector<16x8xf32>
      %cst_144 = arith.constant dense<0xFF800000> : vector<8xf32>
      %593 = vector.multi_reduction <maximumf>, %592, %cst_144 [0] : vector<16x8xf32> to vector<8xf32>
      %594 = vector.shape_cast %593 : vector<8xf32> to vector<1x8xf32>
      %595 = arith.andi %558, %64 : i1
      %596 = arith.select %595, %594, %2 : vector<1x8xf32>
      %c45 = arith.constant 45 : index
      %c0_145 = arith.constant 0 : index
      %597 = vector.load %arg4[%c45, %c0_145] : memref<49x8xf32, #tpu.memory_space<vmem>>, vector<1x8xf32>
      tpu.vector_store %arg4[%c45, %c0_145], %596 {strides = array<i32>} : memref<49x8xf32, #tpu.memory_space<vmem>>, vector<1x8xf32>,
      %598 = vector.shape_cast %77 : vector<16x1xi1> to vector<16x1xi1>
      %599 = vector.broadcast %598 : vector<16x1xi1> to vector<16x8xi1>
      %600 = vector.broadcast %cst_1 : f32 to vector<16x8xf32>
      %601 = arith.select %599, %561, %600 : vector<16x8xi1>, vector<16x8xf32>
      %cst_146 = arith.constant dense<0xFF800000> : vector<8xf32>
      %602 = vector.multi_reduction <maximumf>, %601, %cst_146 [0] : vector<16x8xf32> to vector<8xf32>
      %603 = vector.shape_cast %602 : vector<8xf32> to vector<1x8xf32>
      %604 = arith.andi %558, %78 : i1
      %605 = arith.select %604, %603, %2 : vector<1x8xf32>
      %c46 = arith.constant 46 : index
      %c0_147 = arith.constant 0 : index
      %606 = vector.load %arg4[%c46, %c0_147] : memref<49x8xf32, #tpu.memory_space<vmem>>, vector<1x8xf32>
      tpu.vector_store %arg4[%c46, %c0_147], %605 {strides = array<i32>} : memref<49x8xf32, #tpu.memory_space<vmem>>, vector<1x8xf32>,
      %607 = vector.shape_cast %91 : vector<16x1xi1> to vector<16x1xi1>
      %608 = vector.broadcast %607 : vector<16x1xi1> to vector<16x8xi1>
      %609 = vector.broadcast %cst_1 : f32 to vector<16x8xf32>
      %610 = arith.select %608, %561, %609 : vector<16x8xi1>, vector<16x8xf32>
      %cst_148 = arith.constant dense<0xFF800000> : vector<8xf32>
      %611 = vector.multi_reduction <maximumf>, %610, %cst_148 [0] : vector<16x8xf32> to vector<8xf32>
      %612 = vector.shape_cast %611 : vector<8xf32> to vector<1x8xf32>
      %613 = arith.andi %558, %92 : i1
      %614 = arith.select %613, %612, %2 : vector<1x8xf32>
      %c47 = arith.constant 47 : index
      %c0_149 = arith.constant 0 : index
      %615 = vector.load %arg4[%c47, %c0_149] : memref<49x8xf32, #tpu.memory_space<vmem>>, vector<1x8xf32>
      tpu.vector_store %arg4[%c47, %c0_149], %614 {strides = array<i32>} : memref<49x8xf32, #tpu.memory_space<vmem>>, vector<1x8xf32>,
      %616 = vector.shape_cast %105 : vector<16x1xi1> to vector<16x1xi1>
      %617 = vector.broadcast %616 : vector<16x1xi1> to vector<16x8xi1>
      %618 = vector.broadcast %cst_1 : f32 to vector<16x8xf32>
      %619 = arith.select %617, %561, %618 : vector<16x8xi1>, vector<16x8xf32>
      %cst_150 = arith.constant dense<0xFF800000> : vector<8xf32>
      %620 = vector.multi_reduction <maximumf>, %619, %cst_150 [0] : vector<16x8xf32> to vector<8xf32>
      %621 = vector.shape_cast %620 : vector<8xf32> to vector<1x8xf32>
      %622 = arith.andi %558, %106 : i1
      %623 = arith.select %622, %621, %2 : vector<1x8xf32>
      %c48 = arith.constant 48 : index
      %c0_151 = arith.constant 0 : index
      %624 = vector.load %arg4[%c48, %c0_151] : memref<49x8xf32, #tpu.memory_space<vmem>>, vector<1x8xf32>
      tpu.vector_store %arg4[%c48, %c0_151], %623 {strides = array<i32>} : memref<49x8xf32, #tpu.memory_space<vmem>>, vector<1x8xf32>,
      %c0_152 = arith.constant 0 : index
      %c0_153 = arith.constant 0 : index
      %625 = vector.load %arg4[%c0_152, %c0_153] : memref<49x8xf32, #tpu.memory_space<vmem>>, vector<49x8xf32>
      %626 = vector.shape_cast %625 : vector<49x8xf32> to vector<1x49x8xf32>
      %627 = arith.truncf %626 : vector<1x49x8xf32> to vector<1x49x8xbf16>
      %628 = arith.index_cast %5 : i32 to index
      %c0_154 = arith.constant 0 : index
      %c0_155 = arith.constant 0 : index
      %629 = vector.load %arg3[%628, %c0_154, %c0_155] : memref<8x49x8xbf16, #tpu.memory_space<vmem>>, vector<1x49x8xbf16>
      tpu.vector_store %arg3[%628, %c0_154, %c0_155], %627 {strides = array<i32>} : memref<8x49x8xbf16, #tpu.memory_space<vmem>>, vector<1x49x8xbf16>,
    }
    %c8_i32_2 = arith.constant 8 : i32
    return
  }
  func.func @transform_0(%arg0: i32) -> i32 {
    %c0_i32 = arith.constant 0 : i32
    %c0_i32_0 = arith.constant 0 : i32
    return %c0_i32 : i32
  }
  func.func @transform_1(%arg0: i32) -> (i32, i32, i32) {
    %c0_i32 = arith.constant 0 : i32
    %c0_i32_0 = arith.constant 0 : i32
    %c0_i32_1 = arith.constant 0 : i32
    %c0_i32_2 = arith.constant 0 : i32
    return %c0_i32, %c0_i32_0, %c0_i32_1 : i32, i32, i32
  }
  func.func @transform_2(%arg0: i32) -> (i32, i32, i32) {
    %c0_i32 = arith.constant 0 : i32
    %c0_i32_0 = arith.constant 0 : i32
    %c0_i32_1 = arith.constant 0 : i32
    return %arg0, %c0_i32, %c0_i32_0 : i32, i32, i32
  }
}

</mosaic_0001>

<llo_original>
// kernel: tpu_custom_call.1
$region0: #{tpu_custom_call.1}
  #allocation0 [shape = 'u32[]', space=smem, size = 0x4, offset = 0x4, fixed_abs, tag = 'smem constant byte address 0x4 - core index']
  #allocation1 [shape = 'u32[72,128]{1,0:T(1,128)}', space=vmem, size = 0x9000, scoped, tag = 'internal scratch']
  #allocation2 [shape = 'f32[49,8]{1,0:T(8,128)}', space=vmem, size = 0x7000, scoped, tag = 'scratch operand']
  %s0 = inlined_call_operand.hbm [shape: s32[3584], index: 0, kind: input, shape index: {}]
  %s1 = inlined_call_operand.vmem [shape: f32[16,16,8], index: 1, kind: input, shape index: {}]
  %s2 = inlined_call_operand.vmem [shape: bf16[128,49,8], index: 2, kind: output, shape index: {}]
  %s3 = sld [smem:[#allocation0]]
  $region101: #{tpu_custom_call.1} parent=0
    _
  %s5 = ssub.s32 1, %s3
  %s6 = scalar_select 0, %s5, %s3
  $region1: #{tpu_custom_call.1} parent=0
    #allocation3 [shape = 'u8[14336]{0}', space=smem, size = 0x3800, scoped, tag = 'input window, operand 0, single buffered']
    #allocation4 [shape = 's32[2]{0}', space=sflag, size = 0x8, scoped, tag = 'scoped memory for tpu_custom_call.1']
    %7 = vsyncpa [#allocation4], 0
    loop: start=0, step=1, limit=18
    $region2: #{tpu_custom_call.1} parent=1 // loop_pre_header
      _
    $region3: #{tpu_custom_call.1} parent=1 // loop_header
      %s9 = sphi 0, %s13
      %p10 = scmp.ge.s32.totalorder %s9, 18
      %s17 = sphi 0, %s17
      %s19 = sphi 0, %s17
      %s20 = sphi 0, %s19
      %s34 = sphi 0, %s20
      %s38 = sphi 0, %s38
      %s40 = sphi 0, %s38
      %s41 = sphi 0, %s40
      %s55 = sphi 0, %s41
      %s61 = sphi 0, %s63
      %s64 = sphi 0, %s61
      %s65 = sphi 0, %s64
      %s81 = sphi 0, %s65
    $region4: #{tpu_custom_call.1} parent=1 // loop_header_branch
      %12 = sbr.rel (%p10) target = $region8
    $region5: #{tpu_custom_call.1} parent=1 // loop_body
      %s14 = ssub.s32 %s9, 1
      %s15 = ssub.s32 %s9, 2
      %s16 = sadd.s32 %s9, 1
      %s18 = sadd.s32 %s17, 1
      %p21 = scmp.eq.s32.totalorder %s9, 15
      %p22 = scmp.ne.s32.totalorder %s17, %s19
      %p23 = scmp.eq.s32.totalorder %s9, 0
      %p24 = por %p22, %p23
      %p25 = scmp.ne.s32.totalorder %s17, %s19
      %p26 = scmp.eq.s32.totalorder %s14, 15
      %p27 = por %p25, %p26
      %p28 = scmp.ne.s32.totalorder %s19, %s20
      %p29 = scmp.eq.s32.totalorder %s14, 0
      %p30 = por %p28, %p29
      %p31 = scmp.ne.s32.totalorder %s19, %s20
      %p32 = scmp.eq.s32.totalorder %s15, 15
      %p33 = por %p31, %p32
      %p35 = scmp.ne.s32.totalorder %s20, %s34
      %p36 = scmp.eq.s32.totalorder %s15, 0
      %p37 = por %p35, %p36
      %s39 = sadd.s32 %s38, 1
      %p42 = scmp.eq.s32.totalorder %s9, 15
      %p43 = scmp.ne.s32.totalorder %s38, %s40
      %p44 = scmp.eq.s32.totalorder %s9, 0
      %p45 = por %p43, %p44
      %p46 = scmp.ne.s32.totalorder %s38, %s40
      %p47 = scmp.eq.s32.totalorder %s14, 15
      %p48 = por %p46, %p47
      %p49 = scmp.ne.s32.totalorder %s40, %s41
      %p50 = scmp.eq.s32.totalorder %s14, 0
      %p51 = por %p49, %p50
      %p52 = scmp.ne.s32.totalorder %s40, %s41
      %p53 = scmp.eq.s32.totalorder %s15, 15
      %p54 = por %p52, %p53
      %p56 = scmp.ne.s32.totalorder %s41, %s55
      %p57 = scmp.eq.s32.totalorder %s15, 0
      %p58 = por %p56, %p57
      %s59 = ssub.s32 %s9, %s16
      %p60 = scmp.eq.s32.totalorder %s59, 0
      %s62 = sadd.s32 %s61, 1
      %s63 = scalar_select %p60, %s61, %s62
      %p66 = pneg %p60
      %p67 = scmp.eq.s32.totalorder %s9, 15
      %p68 = por %p66, %p67
      %p69 = scmp.ne.s32.totalorder %s61, %s64
      %p70 = scmp.eq.s32.totalorder %s9, 0
      %p71 = por %p69, %p70
      %p72 = scmp.ne.s32.totalorder %s61, %s64
      %p73 = scmp.eq.s32.totalorder %s14, 15
      %p74 = por %p72, %p73
      %p75 = scmp.ne.s32.totalorder %s64, %s65
      %p76 = scmp.eq.s32.totalorder %s14, 0
      %p77 = por %p75, %p76
      %p78 = scmp.ne.s32.totalorder %s64, %s65
      %p79 = scmp.eq.s32.totalorder %s15, 15
      %p80 = por %p78, %p79
      %p82 = scmp.ne.s32.totalorder %s65, %s81
      %p83 = scmp.eq.s32.totalorder %s15, 0
      %p84 = por %p82, %p83
      %p85 = scmp.le.s32.totalorder 1, %s9
      %p86 = scmp.lt.s32.totalorder %s9, 17
      %p87 = pnand %p85, %p86
      %p88 = pneg %p87
      // Predicated region
      $region9: #{tpu_custom_call.1} parent=5 // pred_check
        _
      $region10: #{tpu_custom_call.1} parent=5 // pred_check_branch
        %90 = sbr.rel (%p87) target = $region12
      $region11: #{tpu_custom_call.1} parent=5 // pred_region
        %s91 = ssub.s32 %s9, 1
        // Predicated region
        $region13: #{tpu_custom_call.1} parent=11 // pred_check
          %p92 = pneg %p30
        $region14: #{tpu_custom_call.1} parent=11 // pred_check_branch
          %94 = sbr.rel (%p92) target = $region16
        $region15: #{tpu_custom_call.1} parent=11 // pred_region
          %96 = vsyncadd [#allocation4], 0
          %s98 = sshll.u32 %s0, 4
          %s99 = int_to_ptr.hbm [resolvable:$true] %s98
          %101 = dma.hbm_to_smem %s99, 448, [#allocation3], [#allocation4]
        $region16: #{tpu_custom_call.1} parent=11 // pred_fallthru
          _
        // Predicated region
        $region17: #{tpu_custom_call.1} parent=11 // pred_check
          %p102 = pneg %p51
        $region18: #{tpu_custom_call.1} parent=11 // pred_check_branch
          %104 = sbr.rel (%p102) target = $region20
        $region19: #{tpu_custom_call.1} parent=11 // pred_region
          _
        $region20: #{tpu_custom_call.1} parent=11 // pred_fallthru
          _
      $region12: #{tpu_custom_call.1} parent=5 // pred_fallthru
        _
      %p105 = scmp.lt.s32.totalorder %s9, 16
      // Predicated region
      $region21: #{tpu_custom_call.1} parent=5 // pred_check
        %p106 = pneg %p105
      $region22: #{tpu_custom_call.1} parent=5 // pred_check_branch
        %108 = sbr.rel (%p106) target = $region24
      $region23: #{tpu_custom_call.1} parent=5 // pred_region
        _
      $region24: #{tpu_custom_call.1} parent=5 // pred_fallthru
        _
      %p109 = scmp.le.s32.totalorder 1, %s9
      %p110 = scmp.lt.s32.totalorder %s9, 17
      %p111 = pnand %p109, %p110
      %p112 = pneg %p111
      // Predicated region
      $region25: #{tpu_custom_call.1} parent=5 // pred_check
        _
      $region26: #{tpu_custom_call.1} parent=5 // pred_check_branch
        %114 = sbr.rel (%p111) target = $region28
      $region27: #{tpu_custom_call.1} parent=5 // pred_region
        %s115 = ssub.s32 %s9, 1
        // Predicated region
        $region29: #{tpu_custom_call.1} parent=27 // pred_check
          %p116 = pneg %p30
        $region30: #{tpu_custom_call.1} parent=27 // pred_check_branch
          %118 = sbr.rel (%p116) target = $region32
        $region31: #{tpu_custom_call.1} parent=27 // pred_region
          %120 = dma.done [#allocation4], 448
        $region32: #{tpu_custom_call.1} parent=27 // pred_fallthru
          _
        %121 = sfence
        %p122 = pneg %p30
        %p123 = pneg %p27
        %p124 = pneg %p51
        %p125 = pneg %p48
        %p126 = pneg %p77
        %p127 = pneg %p74
        %s128 = smul.u32 8, %s14
        %p129 = scmp.lt.s32.totalorder %s128, 127
        %s130 = scalar_select %p129, %s128, 127
        %s131 = smul.addr %s130, 7
        %s132 = smul.addr %s131, 4
        %s133 = scalar_lea.vmem %s2, %s132
        %s134 = smul.u32 8, %s14
        %p135 = scmp.lt.s32.totalorder %s134, 127
        %s136 = scalar_select %p135, %s134, 127
        %s137 = smul.addr %s136, 7
        %s138 = smul.addr %s137, 4
        %s139 = scalar_lea.vmem %s2, %s138
        %s140 = smul.u32 8, %s14
        %v141 = vlaneseq
        %v142 = vshrl.u32 %v141, 7
        %v143 = vadd.s32 %v142, 8
        loop: start=0, step=1, limit=8
        $region33: #{tpu_custom_call.1} parent=27 // loop_pre_header
          _
        $region34: #{tpu_custom_call.1} parent=27 // loop_header
          %s145 = sphi 0, %s149
          %p146 = scmp.ge.s32.totalorder %s145, 8
        $region35: #{tpu_custom_call.1} parent=27 // loop_header_branch
          %148 = sbr.rel (%p146) target = $region39
        $region36: #{tpu_custom_call.1} parent=27 // loop_body
          %s150 = smul.u32 %s14, 8
          %s151 = sadd.s32 %s150, %s145
          %s152 = smul.u32 %s151, 28
          %s153 = sadd.s32 %s152, 14
          %s154 = sld [smem:[#allocation3 + %s153]]
          %s155 = sadd.s32 %s152, 21
          %s156 = sld [smem:[#allocation3 + %s155]]
          %v157 = vstv %s154
          %vm158 = vcmp.ge.s32.totalorder %v142, %v157
          %vm159 = vcmp.ge.s32.totalorder %v143, %v157
          %v160 = vstv %s156
          %vm161 = vcmp.lt.s32.totalorder %v142, %v160
          %vm162 = vcmp.lt.s32.totalorder %v143, %v160
          %vm163 = vmand %vm158, %vm161
          %vm164 = vmand %vm159, %vm162
          %p165 = scmp.gt.s32.totalorder %s156, %s154
          %s166 = sadd.s32 %s152, 15
          %s167 = sld [smem:[#allocation3 + %s166]]
          %s168 = sadd.s32 %s152, 22
          %s169 = sld [smem:[#allocation3 + %s168]]
          %v170 = vstv %s167
          %vm171 = vcmp.ge.s32.totalorder %v142, %v170
          %vm172 = vcmp.ge.s32.totalorder %v143, %v170
          %v173 = vstv %s169
          %vm174 = vcmp.lt.s32.totalorder %v142, %v173
          %vm175 = vcmp.lt.s32.totalorder %v143, %v173
          %vm176 = vmand %vm171, %vm174
          %vm177 = vmand %vm172, %vm175
          %p178 = scmp.gt.s32.totalorder %s169, %s167
          %s179 = sadd.s32 %s152, 16
          %s180 = sld [smem:[#allocation3 + %s179]]
          %s181 = sadd.s32 %s152, 23
          %s182 = sld [smem:[#allocation3 + %s181]]
          %v183 = vstv %s180
          %vm184 = vcmp.ge.s32.totalorder %v142, %v183
          %vm185 = vcmp.ge.s32.totalorder %v143, %v183
          %v186 = vstv %s182
          %vm187 = vcmp.lt.s32.totalorder %v142, %v186
          %vm188 = vcmp.lt.s32.totalorder %v143, %v186
          %vm189 = vmand %vm184, %vm187
          %vm190 = vmand %vm185, %vm188
          %p191 = scmp.gt.s32.totalorder %s182, %s180
          %s192 = sadd.s32 %s152, 17
          %s193 = sld [smem:[#allocation3 + %s192]]
          %s194 = sadd.s32 %s152, 24
          %s195 = sld [smem:[#allocation3 + %s194]]
          %v196 = vstv %s193
          %vm197 = vcmp.ge.s32.totalorder %v142, %v196
          %vm198 = vcmp.ge.s32.totalorder %v143, %v196
          %v199 = vstv %s195
          %vm200 = vcmp.lt.s32.totalorder %v142, %v199
          %vm201 = vcmp.lt.s32.totalorder %v143, %v199
          %vm202 = vmand %vm197, %vm200
          %vm203 = vmand %vm198, %vm201
          %p204 = scmp.gt.s32.totalorder %s195, %s193
          %s205 = sadd.s32 %s152, 18
          %s206 = sld [smem:[#allocation3 + %s205]]
          %s207 = sadd.s32 %s152, 25
          %s208 = sld [smem:[#allocation3 + %s207]]
          %v209 = vstv %s206
          %vm210 = vcmp.ge.s32.totalorder %v142, %v209
          %vm211 = vcmp.ge.s32.totalorder %v143, %v209
          %v212 = vstv %s208
          %vm213 = vcmp.lt.s32.totalorder %v142, %v212
          %vm214 = vcmp.lt.s32.totalorder %v143, %v212
          %vm215 = vmand %vm210, %vm213
          %vm216 = vmand %vm211, %vm214
          %p217 = scmp.gt.s32.totalorder %s208, %s206
          %s218 = sadd.s32 %s152, 19
          %s219 = sld [smem:[#allocation3 + %s218]]
          %s220 = sadd.s32 %s152, 26
          %s221 = sld [smem:[#allocation3 + %s220]]
          %v222 = vstv %s219
          %vm223 = vcmp.ge.s32.totalorder %v142, %v222
          %vm224 = vcmp.ge.s32.totalorder %v143, %v222
          %v225 = vstv %s221
          %vm226 = vcmp.lt.s32.totalorder %v142, %v225
          %vm227 = vcmp.lt.s32.totalorder %v143, %v225
          %vm228 = vmand %vm223, %vm226
          %vm229 = vmand %vm224, %vm227
          %p230 = scmp.gt.s32.totalorder %s221, %s219
          %s231 = sadd.s32 %s152, 20
          %s232 = sld [smem:[#allocation3 + %s231]]
          %s233 = sadd.s32 %s152, 27
          %s234 = sld [smem:[#allocation3 + %s233]]
          %v235 = vstv %s232
          %vm236 = vcmp.ge.s32.totalorder %v142, %v235
          %vm237 = vcmp.ge.s32.totalorder %v143, %v235
          %v238 = vstv %s234
          %vm239 = vcmp.lt.s32.totalorder %v142, %v238
          %vm240 = vcmp.lt.s32.totalorder %v143, %v238
          %vm241 = vmand %vm236, %vm239
          %vm242 = vmand %vm237, %vm240
          %p243 = scmp.gt.s32.totalorder %s234, %s232
          %s244 = sld [smem:[#allocation3 + %s152]]
          %s245 = sadd.s32 %s152, 7
          %s246 = sld [smem:[#allocation3 + %s245]]
          %p247 = scmp.gt.s32.totalorder %s246, %s244
          // While loop
          $region40: #{tpu_custom_call.1} parent=36 // loop_pre_header
            _
          $region41: #{tpu_custom_call.1} parent=36 // loop_header
            %s249 = sphi %s244, %s251
            %p250 = scmp.ge.s32.totalorder %s249, %s246
            %v254 = vphi -inf, %v260
            %v255 = vphi -inf, %v261
          $region42: #{tpu_custom_call.1} parent=36 // loop_header_branch
            %253 = sbr.rel (%p250) target = $region46
          $region43: #{tpu_custom_call.1} parent=36 // loop_body
            %s256 = smul.u32 %s249, 16
            %s257 = scalar_lea.vmem %s1, %s256
            %v258 = vld [vmem:[%s257] sm:$0xff]
            %v259 = vld [vmem:[%s257 + $0x8] sm:$0xff]
            %v260 = vmax.f32 %v254, %v258
            %v261 = vmax.f32 %v255, %v259
          $region44: #{tpu_custom_call.1} parent=36 // loop_footer
            %s251 = sadd.s32 %s249, 1
          $region45: #{tpu_custom_call.1} parent=36 // loop_footer_branch
            %248 = sbr.rel target = $region41
          $region46: #{tpu_custom_call.1} parent=36 // loop_exit
            _
          %v262 = vsel %vm163, 1, 0
          %v263 = vsel %vm164, 1, 0
          %vm264 = vcmp.eq.s32.totalorder %v262, 1
          %vm265 = vcmp.eq.s32.totalorder %v263, 1
          %v266 = vsel %vm264, %v254, -inf
          %v267 = vsel %vm265, %v255, -inf
          %vm268 = vcmask 64512
          %v269 = vsel %vm268, %v266, -inf
          %v270 = vsel %vm268, %v267, -inf
          %v271 = vmax.f32 %v269, %v270
          %v272 = vrot.slane %v271, 4
          %v273 = vmax.f32 %v271, %v272
          %v274 = vrot.slane %v273, 2
          %v275 = vmax.f32 %v273, %v274
          %v276 = vrot.slane %v275, 1
          %v277 = vmax.f32 %v275, %v276
          %p278 = pnand %p247, %p165
          %p279 = pneg %p278
          %s280 = scalar_select %p279, 1, 0
          %v281 = vstv %s280
          %vm282 = vcmp.eq.s32.totalorder %v281, 1
          %v283 = vsel %vm282, %v277, 0.0
          %vm284 = vcmask 57344
          %285 = vst.msk [vmem:[#allocation2] sm:$0x1] %vm284, %v283
          %v286 = vsel %vm176, 1, 0
          %v287 = vsel %vm177, 1, 0
          %vm288 = vcmp.eq.s32.totalorder %v286, 1
          %vm289 = vcmp.eq.s32.totalorder %v287, 1
          %v290 = vsel %vm288, %v254, -inf
          %v291 = vsel %vm289, %v255, -inf
          %v292 = vsel %vm268, %v290, -inf
          %v293 = vsel %vm268, %v291, -inf
          %v294 = vmax.f32 %v292, %v293
          %v295 = vrot.slane %v294, 4
          %v296 = vmax.f32 %v294, %v295
          %v297 = vrot.slane %v296, 2
          %v298 = vmax.f32 %v296, %v297
          %v299 = vrot.slane %v298, 1
          %v300 = vmax.f32 %v298, %v299
          %p301 = pnand %p247, %p178
          %p302 = pneg %p301
          %s303 = scalar_select %p302, 1, 0
          %v304 = vstv %s303
          %vm305 = vcmp.eq.s32.totalorder %v304, 1
          %v306 = vsel %vm305, %v300, 0.0
          %307 = vst.msk [vmem:[#allocation2 + $0x1] sm:$0x1] %vm284, %v306
          %v308 = vsel %vm189, 1, 0
          %v309 = vsel %vm190, 1, 0
          %vm310 = vcmp.eq.s32.totalorder %v308, 1
          %vm311 = vcmp.eq.s32.totalorder %v309, 1
          %v312 = vsel %vm310, %v254, -inf
          %v313 = vsel %vm311, %v255, -inf
          %v314 = vsel %vm268, %v312, -inf
          %v315 = vsel %vm268, %v313, -inf
          %v316 = vmax.f32 %v314, %v315
          %v317 = vrot.slane %v316, 4
          %v318 = vmax.f32 %v316, %v317
          %v319 = vrot.slane %v318, 2
          %v320 = vmax.f32 %v318, %v319
          %v321 = vrot.slane %v320, 1
          %v322 = vmax.f32 %v320, %v321
          %p323 = pnand %p247, %p191
          %p324 = pneg %p323
          %s325 = scalar_select %p324, 1, 0
          %v326 = vstv %s325
          %vm327 = vcmp.eq.s32.totalorder %v326, 1
          %v328 = vsel %vm327, %v322, 0.0
          %329 = vst.msk [vmem:[#allocation2 + $0x2] sm:$0x1] %vm284, %v328
          %v330 = vsel %vm202, 1, 0
          %v331 = vsel %vm203, 1, 0
          %vm332 = vcmp.eq.s32.totalorder %v330, 1
          %vm333 = vcmp.eq.s32.totalorder %v331, 1
          %v334 = vsel %vm332, %v254, -inf
          %v335 = vsel %vm333, %v255, -inf
          %v336 = vsel %vm268, %v334, -inf
          %v337 = vsel %vm268, %v335, -inf
          %v338 = vmax.f32 %v336, %v337
          %v339 = vrot.slane %v338, 4
          %v340 = vmax.f32 %v338, %v339
          %v341 = vrot.slane %v340, 2
          %v342 = vmax.f32 %v340, %v341
          %v343 = vrot.slane %v342, 1
          %v344 = vmax.f32 %v342, %v343
          %p345 = pnand %p247, %p204
          %p346 = pneg %p345
          %s347 = scalar_select %p346, 1, 0
          %v348 = vstv %s347
          %vm349 = vcmp.eq.s32.totalorder %v348, 1
          %v350 = vsel %vm349, %v344, 0.0
          %351 = vst.msk [vmem:[#allocation2 + $0x3] sm:$0x1] %vm284, %v350
          %v352 = vsel %vm215, 1, 0
          %v353 = vsel %vm216, 1, 0
          %vm354 = vcmp.eq.s32.totalorder %v352, 1
          %vm355 = vcmp.eq.s32.totalorder %v353, 1
          %v356 = vsel %vm354, %v254, -inf
          %v357 = vsel %vm355, %v255, -inf
          %v358 = vsel %vm268, %v356, -inf
          %v359 = vsel %vm268, %v357, -inf
          %v360 = vmax.f32 %v358, %v359
          %v361 = vrot.slane %v360, 4
          %v362 = vmax.f32 %v360, %v361
          %v363 = vrot.slane %v362, 2
          %v364 = vmax.f32 %v362, %v363
          %v365 = vrot.slane %v364, 1
          %v366 = vmax.f32 %v364, %v365
          %p367 = pnand %p247, %p217
          %p368 = pneg %p367
          %s369 = scalar_select %p368, 1, 0
          %v370 = vstv %s369
          %vm371 = vcmp.eq.s32.totalorder %v370, 1
          %v372 = vsel %vm371, %v366, 0.0
          %373 = vst.msk [vmem:[#allocation2 + $0x4] sm:$0x1] %vm284, %v372
          %v374 = vsel %vm228, 1, 0
          %v375 = vsel %vm229, 1, 0
          %vm376 = vcmp.eq.s32.totalorder %v374, 1
          %vm377 = vcmp.eq.s32.totalorder %v375, 1
          %v378 = vsel %vm376, %v254, -inf
          %v379 = vsel %vm377, %v255, -inf
          %v380 = vsel %vm268, %v378, -inf
          %v381 = vsel %vm268, %v379, -inf
          %v382 = vmax.f32 %v380, %v381
          %v383 = vrot.slane %v382, 4
          %v384 = vmax.f32 %v382, %v383
          %v385 = vrot.slane %v384, 2
          %v386 = vmax.f32 %v384, %v385
          %v387 = vrot.slane %v386, 1
          %v388 = vmax.f32 %v386, %v387
          %p389 = pnand %p247, %p230
          %p390 = pneg %p389
          %s391 = scalar_select %p390, 1, 0
          %v392 = vstv %s391
          %vm393 = vcmp.eq.s32.totalorder %v392, 1
          %v394 = vsel %vm393, %v388, 0.0
          %395 = vst.msk [vmem:[#allocation2 + $0x5] sm:$0x1] %vm284, %v394
          %v396 = vsel %vm241, 1, 0
          %v397 = vsel %vm242, 1, 0
          %vm398 = vcmp.eq.s32.totalorder %v396, 1
          %vm399 = vcmp.eq.s32.totalorder %v397, 1
          %v400 = vsel %vm398, %v254, -inf
          %v401 = vsel %vm399, %v255, -inf
          %v402 = vsel %vm268, %v400, -inf
          %v403 = vsel %vm268, %v401, -inf
          %v404 = vmax.f32 %v402, %v403
          %v405 = vrot.slane %v404, 4
          %v406 = vmax.f32 %v404, %v405
          %v407 = vrot.slane %v406, 2
          %v408 = vmax.f32 %v406, %v407
          %v409 = vrot.slane %v408, 1
          %v410 = vmax.f32 %v408, %v409
          %p411 = pnand %p247, %p243
          %p412 = pneg %p411
          %s413 = scalar_select %p412, 1, 0
          %v414 = vstv %s413
          %vm415 = vcmp.eq.s32.totalorder %v414, 1
          %v416 = vsel %vm415, %v410, 0.0
          %417 = vst.msk [vmem:[#allocation2 + $0x6] sm:$0x1] %vm284, %v416
          %s418 = sadd.s32 %s152, 1
          %s419 = sld [smem:[#allocation3 + %s418]]
          %s420 = sadd.s32 %s152, 8
          %s421 = sld [smem:[#allocation3 + %s420]]
          %p422 = scmp.gt.s32.totalorder %s421, %s419
          // While loop
          $region47: #{tpu_custom_call.1} parent=36 // loop_pre_header
            _
          $region48: #{tpu_custom_call.1} parent=36 // loop_header
            %s424 = sphi %s419, %s426
            %p425 = scmp.ge.s32.totalorder %s424, %s421
            %v429 = vphi -inf, %v435
            %v430 = vphi -inf, %v436
          $region49: #{tpu_custom_call.1} parent=36 // loop_header_branch
            %428 = sbr.rel (%p425) target = $region53
          $region50: #{tpu_custom_call.1} parent=36 // loop_body
            %s431 = smul.u32 %s424, 16
            %s432 = scalar_lea.vmem %s1, %s431
            %v433 = vld [vmem:[%s432] sm:$0xff]
            %v434 = vld [vmem:[%s432 + $0x8] sm:$0xff]
            %v435 = vmax.f32 %v429, %v433
            %v436 = vmax.f32 %v430, %v434
          $region51: #{tpu_custom_call.1} parent=36 // loop_footer
            %s426 = sadd.s32 %s424, 1
          $region52: #{tpu_custom_call.1} parent=36 // loop_footer_branch
            %423 = sbr.rel target = $region48
          $region53: #{tpu_custom_call.1} parent=36 // loop_exit
            _
          %v437 = vsel %vm264, %v429, -inf
          %v438 = vsel %vm265, %v430, -inf
          %v439 = vsel %vm268, %v437, -inf
          %v440 = vsel %vm268, %v438, -inf
          %v441 = vmax.f32 %v439, %v440
          %v442 = vrot.slane %v441, 4
          %v443 = vmax.f32 %v441, %v442
          %v444 = vrot.slane %v443, 2
          %v445 = vmax.f32 %v443, %v444
          %v446 = vrot.slane %v445, 1
          %v447 = vmax.f32 %v445, %v446
          %p448 = pnand %p422, %p165
          %p449 = pneg %p448
          %s450 = scalar_select %p449, 1, 0
          %v451 = vstv %s450
          %vm452 = vcmp.eq.s32.totalorder %v451, 1
          %v453 = vsel %vm452, %v447, 0.0
          %454 = vst.msk [vmem:[#allocation2 + $0x7] sm:$0x1] %vm284, %v453
          %v455 = vsel %vm288, %v429, -inf
          %v456 = vsel %vm289, %v430, -inf
          %v457 = vsel %vm268, %v455, -inf
          %v458 = vsel %vm268, %v456, -inf
          %v459 = vmax.f32 %v457, %v458
          %v460 = vrot.slane %v459, 4
          %v461 = vmax.f32 %v459, %v460
          %v462 = vrot.slane %v461, 2
          %v463 = vmax.f32 %v461, %v462
          %v464 = vrot.slane %v463, 1
          %v465 = vmax.f32 %v463, %v464
          %p466 = pnand %p422, %p178
          %p467 = pneg %p466
          %s468 = scalar_select %p467, 1, 0
          %v469 = vstv %s468
          %vm470 = vcmp.eq.s32.totalorder %v469, 1
          %v471 = vsel %vm470, %v465, 0.0
          %472 = vst.msk [vmem:[#allocation2 + $0x8] sm:$0x1] %vm284, %v471
          %v473 = vsel %vm310, %v429, -inf
          %v474 = vsel %vm311, %v430, -inf
          %v475 = vsel %vm268, %v473, -inf
          %v476 = vsel %vm268, %v474, -inf
          %v477 = vmax.f32 %v475, %v476
          %v478 = vrot.slane %v477, 4
          %v479 = vmax.f32 %v477, %v478
          %v480 = vrot.slane %v479, 2
          %v481 = vmax.f32 %v479, %v480
          %v482 = vrot.slane %v481, 1
          %v483 = vmax.f32 %v481, %v482
          %p484 = pnand %p422, %p191
          %p485 = pneg %p484
          %s486 = scalar_select %p485, 1, 0
          %v487 = vstv %s486
          %vm488 = vcmp.eq.s32.totalorder %v487, 1
          %v489 = vsel %vm488, %v483, 0.0
          %490 = vst.msk [vmem:[#allocation2 + $0x9] sm:$0x1] %vm284, %v489
          %v491 = vsel %vm332, %v429, -inf
          %v492 = vsel %vm333, %v430, -inf
          %v493 = vsel %vm268, %v491, -inf
          %v494 = vsel %vm268, %v492, -inf
          %v495 = vmax.f32 %v493, %v494
          %v496 = vrot.slane %v495, 4
          %v497 = vmax.f32 %v495, %v496
          %v498 = vrot.slane %v497, 2
          %v499 = vmax.f32 %v497, %v498
          %v500 = vrot.slane %v499, 1
          %v501 = vmax.f32 %v499, %v500
          %p502 = pnand %p422, %p204
          %p503 = pneg %p502
          %s504 = scalar_select %p503, 1, 0
          %v505 = vstv %s504
          %vm506 = vcmp.eq.s32.totalorder %v505, 1
          %v507 = vsel %vm506, %v501, 0.0
          %508 = vst.msk [vmem:[#allocation2 + $0xa] sm:$0x1] %vm284, %v507
          %v509 = vsel %vm354, %v429, -inf
          %v510 = vsel %vm355, %v430, -inf
          %v511 = vsel %vm268, %v509, -inf
          %v512 = vsel %vm268, %v510, -inf
          %v513 = vmax.f32 %v511, %v512
          %v514 = vrot.slane %v513, 4
          %v515 = vmax.f32 %v513, %v514
          %v516 = vrot.slane %v515, 2
          %v517 = vmax.f32 %v515, %v516
          %v518 = vrot.slane %v517, 1
          %v519 = vmax.f32 %v517, %v518
          %p520 = pnand %p422, %p217
          %p521 = pneg %p520
          %s522 = scalar_select %p521, 1, 0
          %v523 = vstv %s522
          %vm524 = vcmp.eq.s32.totalorder %v523, 1
          %v525 = vsel %vm524, %v519, 0.0
          %526 = vst.msk [vmem:[#allocation2 + $0xb] sm:$0x1] %vm284, %v525
          %v527 = vsel %vm376, %v429, -inf
          %v528 = vsel %vm377, %v430, -inf
          %v529 = vsel %vm268, %v527, -inf
          %v530 = vsel %vm268, %v528, -inf
          %v531 = vmax.f32 %v529, %v530
          %v532 = vrot.slane %v531, 4
          %v533 = vmax.f32 %v531, %v532
          %v534 = vrot.slane %v533, 2
          %v535 = vmax.f32 %v533, %v534
          %v536 = vrot.slane %v535, 1
          %v537 = vmax.f32 %v535, %v536
          %p538 = pnand %p422, %p230
          %p539 = pneg %p538
          %s540 = scalar_select %p539, 1, 0
          %v541 = vstv %s540
          %vm542 = vcmp.eq.s32.totalorder %v541, 1
          %v543 = vsel %vm542, %v537, 0.0
          %544 = vst.msk [vmem:[#allocation2 + $0xc] sm:$0x1] %vm284, %v543
          %v545 = vsel %vm398, %v429, -inf
          %v546 = vsel %vm399, %v430, -inf
          %v547 = vsel %vm268, %v545, -inf
          %v548 = vsel %vm268, %v546, -inf
          %v549 = vmax.f32 %v547, %v548
          %v550 = vrot.slane %v549, 4
          %v551 = vmax.f32 %v549, %v550
          %v552 = vrot.slane %v551, 2
          %v553 = vmax.f32 %v551, %v552
          %v554 = vrot.slane %v553, 1
          %v555 = vmax.f32 %v553, %v554
          %p556 = pnand %p422, %p243
          %p557 = pneg %p556
          %s558 = scalar_select %p557, 1, 0
          %v559 = vstv %s558
          %vm560 = vcmp.eq.s32.totalorder %v559, 1
          %v561 = vsel %vm560, %v555, 0.0
          %562 = vst.msk [vmem:[#allocation2 + $0xd] sm:$0x1] %vm284, %v561
          %s563 = sadd.s32 %s152, 2
          %s564 = sld [smem:[#allocation3 + %s563]]
          %s565 = sadd.s32 %s152, 9
          %s566 = sld [smem:[#allocation3 + %s565]]
          %p567 = scmp.gt.s32.totalorder %s566, %s564
          // While loop
          $region54: #{tpu_custom_call.1} parent=36 // loop_pre_header
            _
          $region55: #{tpu_custom_call.1} parent=36 // loop_header
            %s569 = sphi %s564, %s571
            %p570 = scmp.ge.s32.totalorder %s569, %s566
            %v574 = vphi -inf, %v580
            %v575 = vphi -inf, %v581
          $region56: #{tpu_custom_call.1} parent=36 // loop_header_branch
            %573 = sbr.rel (%p570) target = $region60
          $region57: #{tpu_custom_call.1} parent=36 // loop_body
            %s576 = smul.u32 %s569, 16
            %s577 = scalar_lea.vmem %s1, %s576
            %v578 = vld [vmem:[%s577] sm:$0xff]
            %v579 = vld [vmem:[%s577 + $0x8] sm:$0xff]
            %v580 = vmax.f32 %v574, %v578
            %v581 = vmax.f32 %v575, %v579
          $region58: #{tpu_custom_call.1} parent=36 // loop_footer
            %s571 = sadd.s32 %s569, 1
          $region59: #{tpu_custom_call.1} parent=36 // loop_footer_branch
            %568 = sbr.rel target = $region55
          $region60: #{tpu_custom_call.1} parent=36 // loop_exit
            _
          %v582 = vsel %vm264, %v574, -inf
          %v583 = vsel %vm265, %v575, -inf
          %v584 = vsel %vm268, %v582, -inf
          %v585 = vsel %vm268, %v583, -inf
          %v586 = vmax.f32 %v584, %v585
          %v587 = vrot.slane %v586, 4
          %v588 = vmax.f32 %v586, %v587
          %v589 = vrot.slane %v588, 2
          %v590 = vmax.f32 %v588, %v589
          %v591 = vrot.slane %v590, 1
          %v592 = vmax.f32 %v590, %v591
          %p593 = pnand %p567, %p165
          %p594 = pneg %p593
          %s595 = scalar_select %p594, 1, 0
          %v596 = vstv %s595
          %vm597 = vcmp.eq.s32.totalorder %v596, 1
          %v598 = vsel %vm597, %v592, 0.0
          %599 = vst.msk [vmem:[#allocation2 + $0xe] sm:$0x1] %vm284, %v598
          %v600 = vsel %vm288, %v574, -inf
          %v601 = vsel %vm289, %v575, -inf
          %v602 = vsel %vm268, %v600, -inf
          %v603 = vsel %vm268, %v601, -inf
          %v604 = vmax.f32 %v602, %v603
          %v605 = vrot.slane %v604, 4
          %v606 = vmax.f32 %v604, %v605
          %v607 = vrot.slane %v606, 2
          %v608 = vmax.f32 %v606, %v607
          %v609 = vrot.slane %v608, 1
          %v610 = vmax.f32 %v608, %v609
          %p611 = pnand %p567, %p178
          %p612 = pneg %p611
          %s613 = scalar_select %p612, 1, 0
          %v614 = vstv %s613
          %vm615 = vcmp.eq.s32.totalorder %v614, 1
          %v616 = vsel %vm615, %v610, 0.0
          %617 = vst.msk [vmem:[#allocation2 + $0xf] sm:$0x1] %vm284, %v616
          %v618 = vsel %vm310, %v574, -inf
          %v619 = vsel %vm311, %v575, -inf
          %v620 = vsel %vm268, %v618, -inf
          %v621 = vsel %vm268, %v619, -inf
          %v622 = vmax.f32 %v620, %v621
          %v623 = vrot.slane %v622, 4
          %v624 = vmax.f32 %v622, %v623
          %v625 = vrot.slane %v624, 2
          %v626 = vmax.f32 %v624, %v625
          %v627 = vrot.slane %v626, 1
          %v628 = vmax.f32 %v626, %v627
          %p629 = pnand %p567, %p191
          %p630 = pneg %p629
          %s631 = scalar_select %p630, 1, 0
          %v632 = vstv %s631
          %vm633 = vcmp.eq.s32.totalorder %v632, 1
          %v634 = vsel %vm633, %v628, 0.0
          %635 = vst.msk [vmem:[#allocation2 + $0x10] sm:$0x1] %vm284, %v634
          %v636 = vsel %vm332, %v574, -inf
          %v637 = vsel %vm333, %v575, -inf
          %v638 = vsel %vm268, %v636, -inf
          %v639 = vsel %vm268, %v637, -inf
          %v640 = vmax.f32 %v638, %v639
          %v641 = vrot.slane %v640, 4
          %v642 = vmax.f32 %v640, %v641
          %v643 = vrot.slane %v642, 2
          %v644 = vmax.f32 %v642, %v643
          %v645 = vrot.slane %v644, 1
          %v646 = vmax.f32 %v644, %v645
          %p647 = pnand %p567, %p204
          %p648 = pneg %p647
          %s649 = scalar_select %p648, 1, 0
          %v650 = vstv %s649
          %vm651 = vcmp.eq.s32.totalorder %v650, 1
          %v652 = vsel %vm651, %v646, 0.0
          %653 = vst.msk [vmem:[#allocation2 + $0x11] sm:$0x1] %vm284, %v652
          %v654 = vsel %vm354, %v574, -inf
          %v655 = vsel %vm355, %v575, -inf
          %v656 = vsel %vm268, %v654, -inf
          %v657 = vsel %vm268, %v655, -inf
          %v658 = vmax.f32 %v656, %v657
          %v659 = vrot.slane %v658, 4
          %v660 = vmax.f32 %v658, %v659
          %v661 = vrot.slane %v660, 2
          %v662 = vmax.f32 %v660, %v661
          %v663 = vrot.slane %v662, 1
          %v664 = vmax.f32 %v662, %v663
          %p665 = pnand %p567, %p217
          %p666 = pneg %p665
          %s667 = scalar_select %p666, 1, 0
          %v668 = vstv %s667
          %vm669 = vcmp.eq.s32.totalorder %v668, 1
          %v670 = vsel %vm669, %v664, 0.0
          %671 = vst.msk [vmem:[#allocation2 + $0x12] sm:$0x1] %vm284, %v670
          %v672 = vsel %vm376, %v574, -inf
          %v673 = vsel %vm377, %v575, -inf
          %v674 = vsel %vm268, %v672, -inf
          %v675 = vsel %vm268, %v673, -inf
          %v676 = vmax.f32 %v674, %v675
          %v677 = vrot.slane %v676, 4
          %v678 = vmax.f32 %v676, %v677
          %v679 = vrot.slane %v678, 2
          %v680 = vmax.f32 %v678, %v679
          %v681 = vrot.slane %v680, 1
          %v682 = vmax.f32 %v680, %v681
          %p683 = pnand %p567, %p230
          %p684 = pneg %p683
          %s685 = scalar_select %p684, 1, 0
          %v686 = vstv %s685
          %vm687 = vcmp.eq.s32.totalorder %v686, 1
          %v688 = vsel %vm687, %v682, 0.0
          %689 = vst.msk [vmem:[#allocation2 + $0x13] sm:$0x1] %vm284, %v688
          %v690 = vsel %vm398, %v574, -inf
          %v691 = vsel %vm399, %v575, -inf
          %v692 = vsel %vm268, %v690, -inf
          %v693 = vsel %vm268, %v691, -inf
          %v694 = vmax.f32 %v692, %v693
          %v695 = vrot.slane %v694, 4
          %v696 = vmax.f32 %v694, %v695
          %v697 = vrot.slane %v696, 2
          %v698 = vmax.f32 %v696, %v697
          %v699 = vrot.slane %v698, 1
          %v700 = vmax.f32 %v698, %v699
          %p701 = pnand %p567, %p243
          %p702 = pneg %p701
          %s703 = scalar_select %p702, 1, 0
          %v704 = vstv %s703
          %vm705 = vcmp.eq.s32.totalorder %v704, 1
          %v706 = vsel %vm705, %v700, 0.0
          %707 = vst.msk [vmem:[#allocation2 + $0x14] sm:$0x1] %vm284, %v706
          %s708 = sadd.s32 %s152, 3
          %s709 = sld [smem:[#allocation3 + %s708]]
          %s710 = sadd.s32 %s152, 10
          %s711 = sld [smem:[#allocation3 + %s710]]
          %p712 = scmp.gt.s32.totalorder %s711, %s709
          // While loop
          $region61: #{tpu_custom_call.1} parent=36 // loop_pre_header
            _
          $region62: #{tpu_custom_call.1} parent=36 // loop_header
            %s714 = sphi %s709, %s716
            %p715 = scmp.ge.s32.totalorder %s714, %s711
            %v719 = vphi -inf, %v725
            %v720 = vphi -inf, %v726
          $region63: #{tpu_custom_call.1} parent=36 // loop_header_branch
            %718 = sbr.rel (%p715) target = $region67
          $region64: #{tpu_custom_call.1} parent=36 // loop_body
            %s721 = smul.u32 %s714, 16
            %s722 = scalar_lea.vmem %s1, %s721
            %v723 = vld [vmem:[%s722] sm:$0xff]
            %v724 = vld [vmem:[%s722 + $0x8] sm:$0xff]
            %v725 = vmax.f32 %v719, %v723
            %v726 = vmax.f32 %v720, %v724
          $region65: #{tpu_custom_call.1} parent=36 // loop_footer
            %s716 = sadd.s32 %s714, 1
          $region66: #{tpu_custom_call.1} parent=36 // loop_footer_branch
            %713 = sbr.rel target = $region62
          $region67: #{tpu_custom_call.1} parent=36 // loop_exit
            _
          %v727 = vsel %vm264, %v719, -inf
          %v728 = vsel %vm265, %v720, -inf
          %v729 = vsel %vm268, %v727, -inf
          %v730 = vsel %vm268, %v728, -inf
          %v731 = vmax.f32 %v729, %v730
          %v732 = vrot.slane %v731, 4
          %v733 = vmax.f32 %v731, %v732
          %v734 = vrot.slane %v733, 2
          %v735 = vmax.f32 %v733, %v734
          %v736 = vrot.slane %v735, 1
          %v737 = vmax.f32 %v735, %v736
          %p738 = pnand %p712, %p165
          %p739 = pneg %p738
          %s740 = scalar_select %p739, 1, 0
          %v741 = vstv %s740
          %vm742 = vcmp.eq.s32.totalorder %v741, 1
          %v743 = vsel %vm742, %v737, 0.0
          %744 = vst.msk [vmem:[#allocation2 + $0x15] sm:$0x1] %vm284, %v743
          %v745 = vsel %vm288, %v719, -inf
          %v746 = vsel %vm289, %v720, -inf
          %v747 = vsel %vm268, %v745, -inf
          %v748 = vsel %vm268, %v746, -inf
          %v749 = vmax.f32 %v747, %v748
          %v750 = vrot.slane %v749, 4
          %v751 = vmax.f32 %v749, %v750
          %v752 = vrot.slane %v751, 2
          %v753 = vmax.f32 %v751, %v752
          %v754 = vrot.slane %v753, 1
          %v755 = vmax.f32 %v753, %v754
          %p756 = pnand %p712, %p178
          %p757 = pneg %p756
          %s758 = scalar_select %p757, 1, 0
          %v759 = vstv %s758
          %vm760 = vcmp.eq.s32.totalorder %v759, 1
          %v761 = vsel %vm760, %v755, 0.0
          %762 = vst.msk [vmem:[#allocation2 + $0x16] sm:$0x1] %vm284, %v761
          %v763 = vsel %vm310, %v719, -inf
          %v764 = vsel %vm311, %v720, -inf
          %v765 = vsel %vm268, %v763, -inf
          %v766 = vsel %vm268, %v764, -inf
          %v767 = vmax.f32 %v765, %v766
          %v768 = vrot.slane %v767, 4
          %v769 = vmax.f32 %v767, %v768
          %v770 = vrot.slane %v769, 2
          %v771 = vmax.f32 %v769, %v770
          %v772 = vrot.slane %v771, 1
          %v773 = vmax.f32 %v771, %v772
          %p774 = pnand %p712, %p191
          %p775 = pneg %p774
          %s776 = scalar_select %p775, 1, 0
          %v777 = vstv %s776
          %vm778 = vcmp.eq.s32.totalorder %v777, 1
          %v779 = vsel %vm778, %v773, 0.0
          %780 = vst.msk [vmem:[#allocation2 + $0x17] sm:$0x1] %vm284, %v779
          %v781 = vsel %vm332, %v719, -inf
          %v782 = vsel %vm333, %v720, -inf
          %v783 = vsel %vm268, %v781, -inf
          %v784 = vsel %vm268, %v782, -inf
          %v785 = vmax.f32 %v783, %v784
          %v786 = vrot.slane %v785, 4
          %v787 = vmax.f32 %v785, %v786
          %v788 = vrot.slane %v787, 2
          %v789 = vmax.f32 %v787, %v788
          %v790 = vrot.slane %v789, 1
          %v791 = vmax.f32 %v789, %v790
          %p792 = pnand %p712, %p204
          %p793 = pneg %p792
          %s794 = scalar_select %p793, 1, 0
          %v795 = vstv %s794
          %vm796 = vcmp.eq.s32.totalorder %v795, 1
          %v797 = vsel %vm796, %v791, 0.0
          %798 = vst.msk [vmem:[#allocation2 + $0x18] sm:$0x1] %vm284, %v797
          %v799 = vsel %vm354, %v719, -inf
          %v800 = vsel %vm355, %v720, -inf
          %v801 = vsel %vm268, %v799, -inf
          %v802 = vsel %vm268, %v800, -inf
          %v803 = vmax.f32 %v801, %v802
          %v804 = vrot.slane %v803, 4
          %v805 = vmax.f32 %v803, %v804
          %v806 = vrot.slane %v805, 2
          %v807 = vmax.f32 %v805, %v806
          %v808 = vrot.slane %v807, 1
          %v809 = vmax.f32 %v807, %v808
          %p810 = pnand %p712, %p217
          %p811 = pneg %p810
          %s812 = scalar_select %p811, 1, 0
          %v813 = vstv %s812
          %vm814 = vcmp.eq.s32.totalorder %v813, 1
          %v815 = vsel %vm814, %v809, 0.0
          %816 = vst.msk [vmem:[#allocation2 + $0x19] sm:$0x1] %vm284, %v815
          %v817 = vsel %vm376, %v719, -inf
          %v818 = vsel %vm377, %v720, -inf
          %v819 = vsel %vm268, %v817, -inf
          %v820 = vsel %vm268, %v818, -inf
          %v821 = vmax.f32 %v819, %v820
          %v822 = vrot.slane %v821, 4
          %v823 = vmax.f32 %v821, %v822
          %v824 = vrot.slane %v823, 2
          %v825 = vmax.f32 %v823, %v824
          %v826 = vrot.slane %v825, 1
          %v827 = vmax.f32 %v825, %v826
          %p828 = pnand %p712, %p230
          %p829 = pneg %p828
          %s830 = scalar_select %p829, 1, 0
          %v831 = vstv %s830
          %vm832 = vcmp.eq.s32.totalorder %v831, 1
          %v833 = vsel %vm832, %v827, 0.0
          %834 = vst.msk [vmem:[#allocation2 + $0x1a] sm:$0x1] %vm284, %v833
          %v835 = vsel %vm398, %v719, -inf
          %v836 = vsel %vm399, %v720, -inf
          %v837 = vsel %vm268, %v835, -inf
          %v838 = vsel %vm268, %v836, -inf
          %v839 = vmax.f32 %v837, %v838
          %v840 = vrot.slane %v839, 4
          %v841 = vmax.f32 %v839, %v840
          %v842 = vrot.slane %v841, 2
          %v843 = vmax.f32 %v841, %v842
          %v844 = vrot.slane %v843, 1
          %v845 = vmax.f32 %v843, %v844
          %p846 = pnand %p712, %p243
          %p847 = pneg %p846
          %s848 = scalar_select %p847, 1, 0
          %v849 = vstv %s848
          %vm850 = vcmp.eq.s32.totalorder %v849, 1
          %v851 = vsel %vm850, %v845, 0.0
          %852 = vst.msk [vmem:[#allocation2 + $0x1b] sm:$0x1] %vm284, %v851
          %s853 = sadd.s32 %s152, 4
          %s854 = sld [smem:[#allocation3 + %s853]]
          %s855 = sadd.s32 %s152, 11
          %s856 = sld [smem:[#allocation3 + %s855]]
          %p857 = scmp.gt.s32.totalorder %s856, %s854
          // While loop
          $region68: #{tpu_custom_call.1} parent=36 // loop_pre_header
            _
          $region69: #{tpu_custom_call.1} parent=36 // loop_header
            %s859 = sphi %s854, %s861
            %p860 = scmp.ge.s32.totalorder %s859, %s856
            %v864 = vphi -inf, %v870
            %v865 = vphi -inf, %v871
          $region70: #{tpu_custom_call.1} parent=36 // loop_header_branch
            %863 = sbr.rel (%p860) target = $region74
          $region71: #{tpu_custom_call.1} parent=36 // loop_body
            %s866 = smul.u32 %s859, 16
            %s867 = scalar_lea.vmem %s1, %s866
            %v868 = vld [vmem:[%s867] sm:$0xff]
            %v869 = vld [vmem:[%s867 + $0x8] sm:$0xff]
            %v870 = vmax.f32 %v864, %v868
            %v871 = vmax.f32 %v865, %v869
          $region72: #{tpu_custom_call.1} parent=36 // loop_footer
            %s861 = sadd.s32 %s859, 1
          $region73: #{tpu_custom_call.1} parent=36 // loop_footer_branch
            %858 = sbr.rel target = $region69
          $region74: #{tpu_custom_call.1} parent=36 // loop_exit
            _
          %v872 = vsel %vm264, %v864, -inf
          %v873 = vsel %vm265, %v865, -inf
          %v874 = vsel %vm268, %v872, -inf
          %v875 = vsel %vm268, %v873, -inf
          %v876 = vmax.f32 %v874, %v875
          %v877 = vrot.slane %v876, 4
          %v878 = vmax.f32 %v876, %v877
          %v879 = vrot.slane %v878, 2
          %v880 = vmax.f32 %v878, %v879
          %v881 = vrot.slane %v880, 1
          %v882 = vmax.f32 %v880, %v881
          %p883 = pnand %p857, %p165
          %p884 = pneg %p883
          %s885 = scalar_select %p884, 1, 0
          %v886 = vstv %s885
          %vm887 = vcmp.eq.s32.totalorder %v886, 1
          %v888 = vsel %vm887, %v882, 0.0
          %889 = vst.msk [vmem:[#allocation2 + $0x1c] sm:$0x1] %vm284, %v888
          %v890 = vsel %vm288, %v864, -inf
          %v891 = vsel %vm289, %v865, -inf
          %v892 = vsel %vm268, %v890, -inf
          %v893 = vsel %vm268, %v891, -inf
          %v894 = vmax.f32 %v892, %v893
          %v895 = vrot.slane %v894, 4
          %v896 = vmax.f32 %v894, %v895
          %v897 = vrot.slane %v896, 2
          %v898 = vmax.f32 %v896, %v897
          %v899 = vrot.slane %v898, 1
          %v900 = vmax.f32 %v898, %v899
          %p901 = pnand %p857, %p178
          %p902 = pneg %p901
          %s903 = scalar_select %p902, 1, 0
          %v904 = vstv %s903
          %vm905 = vcmp.eq.s32.totalorder %v904, 1
          %v906 = vsel %vm905, %v900, 0.0
          %907 = vst.msk [vmem:[#allocation2 + $0x1d] sm:$0x1] %vm284, %v906
          %v908 = vsel %vm310, %v864, -inf
          %v909 = vsel %vm311, %v865, -inf
          %v910 = vsel %vm268, %v908, -inf
          %v911 = vsel %vm268, %v909, -inf
          %v912 = vmax.f32 %v910, %v911
          %v913 = vrot.slane %v912, 4
          %v914 = vmax.f32 %v912, %v913
          %v915 = vrot.slane %v914, 2
          %v916 = vmax.f32 %v914, %v915
          %v917 = vrot.slane %v916, 1
          %v918 = vmax.f32 %v916, %v917
          %p919 = pnand %p857, %p191
          %p920 = pneg %p919
          %s921 = scalar_select %p920, 1, 0
          %v922 = vstv %s921
          %vm923 = vcmp.eq.s32.totalorder %v922, 1
          %v924 = vsel %vm923, %v918, 0.0
          %925 = vst.msk [vmem:[#allocation2 + $0x1e] sm:$0x1] %vm284, %v924
          %v926 = vsel %vm332, %v864, -inf
          %v927 = vsel %vm333, %v865, -inf
          %v928 = vsel %vm268, %v926, -inf
          %v929 = vsel %vm268, %v927, -inf
          %v930 = vmax.f32 %v928, %v929
          %v931 = vrot.slane %v930, 4
          %v932 = vmax.f32 %v930, %v931
          %v933 = vrot.slane %v932, 2
          %v934 = vmax.f32 %v932, %v933
          %v935 = vrot.slane %v934, 1
          %v936 = vmax.f32 %v934, %v935
          %p937 = pnand %p857, %p204
          %p938 = pneg %p937
          %s939 = scalar_select %p938, 1, 0
          %v940 = vstv %s939
          %vm941 = vcmp.eq.s32.totalorder %v940, 1
          %v942 = vsel %vm941, %v936, 0.0
          %943 = vst.msk [vmem:[#allocation2 + $0x1f] sm:$0x1] %vm284, %v942
          %v944 = vsel %vm354, %v864, -inf
          %v945 = vsel %vm355, %v865, -inf
          %v946 = vsel %vm268, %v944, -inf
          %v947 = vsel %vm268, %v945, -inf
          %v948 = vmax.f32 %v946, %v947
          %v949 = vrot.slane %v948, 4
          %v950 = vmax.f32 %v948, %v949
          %v951 = vrot.slane %v950, 2
          %v952 = vmax.f32 %v950, %v951
          %v953 = vrot.slane %v952, 1
          %v954 = vmax.f32 %v952, %v953
          %p955 = pnand %p857, %p217
          %p956 = pneg %p955
          %s957 = scalar_select %p956, 1, 0
          %v958 = vstv %s957
          %vm959 = vcmp.eq.s32.totalorder %v958, 1
          %v960 = vsel %vm959, %v954, 0.0
          %961 = vst.msk [vmem:[#allocation2 + $0x20] sm:$0x1] %vm284, %v960
          %v962 = vsel %vm376, %v864, -inf
          %v963 = vsel %vm377, %v865, -inf
          %v964 = vsel %vm268, %v962, -inf
          %v965 = vsel %vm268, %v963, -inf
          %v966 = vmax.f32 %v964, %v965
          %v967 = vrot.slane %v966, 4
          %v968 = vmax.f32 %v966, %v967
          %v969 = vrot.slane %v968, 2
          %v970 = vmax.f32 %v968, %v969
          %v971 = vrot.slane %v970, 1
          %v972 = vmax.f32 %v970, %v971
          %p973 = pnand %p857, %p230
          %p974 = pneg %p973
          %s975 = scalar_select %p974, 1, 0
          %v976 = vstv %s975
          %vm977 = vcmp.eq.s32.totalorder %v976, 1
          %v978 = vsel %vm977, %v972, 0.0
          %979 = vst.msk [vmem:[#allocation2 + $0x21] sm:$0x1] %vm284, %v978
          %v980 = vsel %vm398, %v864, -inf
          %v981 = vsel %vm399, %v865, -inf
          %v982 = vsel %vm268, %v980, -inf
          %v983 = vsel %vm268, %v981, -inf
          %v984 = vmax.f32 %v982, %v983
          %v985 = vrot.slane %v984, 4
          %v986 = vmax.f32 %v984, %v985
          %v987 = vrot.slane %v986, 2
          %v988 = vmax.f32 %v986, %v987
          %v989 = vrot.slane %v988, 1
          %v990 = vmax.f32 %v988, %v989
          %p991 = pnand %p857, %p243
          %p992 = pneg %p991
          %s993 = scalar_select %p992, 1, 0
          %v994 = vstv %s993
          %vm995 = vcmp.eq.s32.totalorder %v994, 1
          %v996 = vsel %vm995, %v990, 0.0
          %997 = vst.msk [vmem:[#allocation2 + $0x22] sm:$0x1] %vm284, %v996
          %s998 = sadd.s32 %s152, 5
          %s999 = sld [smem:[#allocation3 + %s998]]
          %s1000 = sadd.s32 %s152, 12
          %s1001 = sld [smem:[#allocation3 + %s1000]]
          %p1002 = scmp.gt.s32.totalorder %s1001, %s999
          // While loop
          $region75: #{tpu_custom_call.1} parent=36 // loop_pre_header
            _
          $region76: #{tpu_custom_call.1} parent=36 // loop_header
            %s1004 = sphi %s999, %s1006
            %p1005 = scmp.ge.s32.totalorder %s1004, %s1001
            %v1009 = vphi -inf, %v1015
            %v1010 = vphi -inf, %v1016
          $region77: #{tpu_custom_call.1} parent=36 // loop_header_branch
            %1008 = sbr.rel (%p1005) target = $region81
          $region78: #{tpu_custom_call.1} parent=36 // loop_body
            %s1011 = smul.u32 %s1004, 16
            %s1012 = scalar_lea.vmem %s1, %s1011
            %v1013 = vld [vmem:[%s1012] sm:$0xff]
            %v1014 = vld [vmem:[%s1012 + $0x8] sm:$0xff]
            %v1015 = vmax.f32 %v1009, %v1013
            %v1016 = vmax.f32 %v1010, %v1014
          $region79: #{tpu_custom_call.1} parent=36 // loop_footer
            %s1006 = sadd.s32 %s1004, 1
          $region80: #{tpu_custom_call.1} parent=36 // loop_footer_branch
            %1003 = sbr.rel target = $region76
          $region81: #{tpu_custom_call.1} parent=36 // loop_exit
            _
          %v1017 = vsel %vm264, %v1009, -inf
          %v1018 = vsel %vm265, %v1010, -inf
          %v1019 = vsel %vm268, %v1017, -inf
          %v1020 = vsel %vm268, %v1018, -inf
          %v1021 = vmax.f32 %v1019, %v1020
          %v1022 = vrot.slane %v1021, 4
          %v1023 = vmax.f32 %v1021, %v1022
          %v1024 = vrot.slane %v1023, 2
          %v1025 = vmax.f32 %v1023, %v1024
          %v1026 = vrot.slane %v1025, 1
          %v1027 = vmax.f32 %v1025, %v1026
          %p1028 = pnand %p1002, %p165
          %p1029 = pneg %p1028
          %s1030 = scalar_select %p1029, 1, 0
          %v1031 = vstv %s1030
          %vm1032 = vcmp.eq.s32.totalorder %v1031, 1
          %v1033 = vsel %vm1032, %v1027, 0.0
          %1034 = vst.msk [vmem:[#allocation2 + $0x23] sm:$0x1] %vm284, %v1033
          %v1035 = vsel %vm288, %v1009, -inf
          %v1036 = vsel %vm289, %v1010, -inf
          %v1037 = vsel %vm268, %v1035, -inf
          %v1038 = vsel %vm268, %v1036, -inf
          %v1039 = vmax.f32 %v1037, %v1038
          %v1040 = vrot.slane %v1039, 4
          %v1041 = vmax.f32 %v1039, %v1040
          %v1042 = vrot.slane %v1041, 2
          %v1043 = vmax.f32 %v1041, %v1042
          %v1044 = vrot.slane %v1043, 1
          %v1045 = vmax.f32 %v1043, %v1044
          %p1046 = pnand %p1002, %p178
          %p1047 = pneg %p1046
          %s1048 = scalar_select %p1047, 1, 0
          %v1049 = vstv %s1048
          %vm1050 = vcmp.eq.s32.totalorder %v1049, 1
          %v1051 = vsel %vm1050, %v1045, 0.0
          %1052 = vst.msk [vmem:[#allocation2 + $0x24] sm:$0x1] %vm284, %v1051
          %v1053 = vsel %vm310, %v1009, -inf
          %v1054 = vsel %vm311, %v1010, -inf
          %v1055 = vsel %vm268, %v1053, -inf
          %v1056 = vsel %vm268, %v1054, -inf
          %v1057 = vmax.f32 %v1055, %v1056
          %v1058 = vrot.slane %v1057, 4
          %v1059 = vmax.f32 %v1057, %v1058
          %v1060 = vrot.slane %v1059, 2
          %v1061 = vmax.f32 %v1059, %v1060
          %v1062 = vrot.slane %v1061, 1
          %v1063 = vmax.f32 %v1061, %v1062
          %p1064 = pnand %p1002, %p191
          %p1065 = pneg %p1064
          %s1066 = scalar_select %p1065, 1, 0
          %v1067 = vstv %s1066
          %vm1068 = vcmp.eq.s32.totalorder %v1067, 1
          %v1069 = vsel %vm1068, %v1063, 0.0
          %1070 = vst.msk [vmem:[#allocation2 + $0x25] sm:$0x1] %vm284, %v1069
          %v1071 = vsel %vm332, %v1009, -inf
          %v1072 = vsel %vm333, %v1010, -inf
          %v1073 = vsel %vm268, %v1071, -inf
          %v1074 = vsel %vm268, %v1072, -inf
          %v1075 = vmax.f32 %v1073, %v1074
          %v1076 = vrot.slane %v1075, 4
          %v1077 = vmax.f32 %v1075, %v1076
          %v1078 = vrot.slane %v1077, 2
          %v1079 = vmax.f32 %v1077, %v1078
          %v1080 = vrot.slane %v1079, 1
          %v1081 = vmax.f32 %v1079, %v1080
          %p1082 = pnand %p1002, %p204
          %p1083 = pneg %p1082
          %s1084 = scalar_select %p1083, 1, 0
          %v1085 = vstv %s1084
          %vm1086 = vcmp.eq.s32.totalorder %v1085, 1
          %v1087 = vsel %vm1086, %v1081, 0.0
          %1088 = vst.msk [vmem:[#allocation2 + $0x26] sm:$0x1] %vm284, %v1087
          %v1089 = vsel %vm354, %v1009, -inf
          %v1090 = vsel %vm355, %v1010, -inf
          %v1091 = vsel %vm268, %v1089, -inf
          %v1092 = vsel %vm268, %v1090, -inf
          %v1093 = vmax.f32 %v1091, %v1092
          %v1094 = vrot.slane %v1093, 4
          %v1095 = vmax.f32 %v1093, %v1094
          %v1096 = vrot.slane %v1095, 2
          %v1097 = vmax.f32 %v1095, %v1096
          %v1098 = vrot.slane %v1097, 1
          %v1099 = vmax.f32 %v1097, %v1098
          %p1100 = pnand %p1002, %p217
          %p1101 = pneg %p1100
          %s1102 = scalar_select %p1101, 1, 0
          %v1103 = vstv %s1102
          %vm1104 = vcmp.eq.s32.totalorder %v1103, 1
          %v1105 = vsel %vm1104, %v1099, 0.0
          %1106 = vst.msk [vmem:[#allocation2 + $0x27] sm:$0x1] %vm284, %v1105
          %v1107 = vsel %vm376, %v1009, -inf
          %v1108 = vsel %vm377, %v1010, -inf
          %v1109 = vsel %vm268, %v1107, -inf
          %v1110 = vsel %vm268, %v1108, -inf
          %v1111 = vmax.f32 %v1109, %v1110
          %v1112 = vrot.slane %v1111, 4
          %v1113 = vmax.f32 %v1111, %v1112
          %v1114 = vrot.slane %v1113, 2
          %v1115 = vmax.f32 %v1113, %v1114
          %v1116 = vrot.slane %v1115, 1
          %v1117 = vmax.f32 %v1115, %v1116
          %p1118 = pnand %p1002, %p230
          %p1119 = pneg %p1118
          %s1120 = scalar_select %p1119, 1, 0
          %v1121 = vstv %s1120
          %vm1122 = vcmp.eq.s32.totalorder %v1121, 1
          %v1123 = vsel %vm1122, %v1117, 0.0
          %1124 = vst.msk [vmem:[#allocation2 + $0x28] sm:$0x1] %vm284, %v1123
          %v1125 = vsel %vm398, %v1009, -inf
          %v1126 = vsel %vm399, %v1010, -inf
          %v1127 = vsel %vm268, %v1125, -inf
          %v1128 = vsel %vm268, %v1126, -inf
          %v1129 = vmax.f32 %v1127, %v1128
          %v1130 = vrot.slane %v1129, 4
          %v1131 = vmax.f32 %v1129, %v1130
          %v1132 = vrot.slane %v1131, 2
          %v1133 = vmax.f32 %v1131, %v1132
          %v1134 = vrot.slane %v1133, 1
          %v1135 = vmax.f32 %v1133, %v1134
          %p1136 = pnand %p1002, %p243
          %p1137 = pneg %p1136
          %s1138 = scalar_select %p1137, 1, 0
          %v1139 = vstv %s1138
          %vm1140 = vcmp.eq.s32.totalorder %v1139, 1
          %v1141 = vsel %vm1140, %v1135, 0.0
          %1142 = vst.msk [vmem:[#allocation2 + $0x29] sm:$0x1] %vm284, %v1141
          %s1143 = sadd.s32 %s152, 6
          %s1144 = sld [smem:[#allocation3 + %s1143]]
          %s1145 = sadd.s32 %s152, 13
          %s1146 = sld [smem:[#allocation3 + %s1145]]
          %p1147 = scmp.gt.s32.totalorder %s1146, %s1144
          // While loop
          $region82: #{tpu_custom_call.1} parent=36 // loop_pre_header
            _
          $region83: #{tpu_custom_call.1} parent=36 // loop_header
            %s1149 = sphi %s1144, %s1151
            %p1150 = scmp.ge.s32.totalorder %s1149, %s1146
            %v1154 = vphi -inf, %v1160
            %v1155 = vphi -inf, %v1161
          $region84: #{tpu_custom_call.1} parent=36 // loop_header_branch
            %1153 = sbr.rel (%p1150) target = $region88
          $region85: #{tpu_custom_call.1} parent=36 // loop_body
            %s1156 = smul.u32 %s1149, 16
            %s1157 = scalar_lea.vmem %s1, %s1156
            %v1158 = vld [vmem:[%s1157] sm:$0xff]
            %v1159 = vld [vmem:[%s1157 + $0x8] sm:$0xff]
            %v1160 = vmax.f32 %v1154, %v1158
            %v1161 = vmax.f32 %v1155, %v1159
          $region86: #{tpu_custom_call.1} parent=36 // loop_footer
            %s1151 = sadd.s32 %s1149, 1
          $region87: #{tpu_custom_call.1} parent=36 // loop_footer_branch
            %1148 = sbr.rel target = $region83
          $region88: #{tpu_custom_call.1} parent=36 // loop_exit
            _
          %v1162 = vsel %vm264, %v1154, -inf
          %v1163 = vsel %vm265, %v1155, -inf
          %v1164 = vsel %vm268, %v1162, -inf
          %v1165 = vsel %vm268, %v1163, -inf
          %v1166 = vmax.f32 %v1164, %v1165
          %v1167 = vrot.slane %v1166, 4
          %v1168 = vmax.f32 %v1166, %v1167
          %v1169 = vrot.slane %v1168, 2
          %v1170 = vmax.f32 %v1168, %v1169
          %v1171 = vrot.slane %v1170, 1
          %v1172 = vmax.f32 %v1170, %v1171
          %p1173 = pnand %p1147, %p165
          %p1174 = pneg %p1173
          %s1175 = scalar_select %p1174, 1, 0
          %v1176 = vstv %s1175
          %vm1177 = vcmp.eq.s32.totalorder %v1176, 1
          %v1178 = vsel %vm1177, %v1172, 0.0
          %1179 = vst.msk [vmem:[#allocation2 + $0x2a] sm:$0x1] %vm284, %v1178
          %v1180 = vsel %vm288, %v1154, -inf
          %v1181 = vsel %vm289, %v1155, -inf
          %v1182 = vsel %vm268, %v1180, -inf
          %v1183 = vsel %vm268, %v1181, -inf
          %v1184 = vmax.f32 %v1182, %v1183
          %v1185 = vrot.slane %v1184, 4
          %v1186 = vmax.f32 %v1184, %v1185
          %v1187 = vrot.slane %v1186, 2
          %v1188 = vmax.f32 %v1186, %v1187
          %v1189 = vrot.slane %v1188, 1
          %v1190 = vmax.f32 %v1188, %v1189
          %p1191 = pnand %p1147, %p178
          %p1192 = pneg %p1191
          %s1193 = scalar_select %p1192, 1, 0
          %v1194 = vstv %s1193
          %vm1195 = vcmp.eq.s32.totalorder %v1194, 1
          %v1196 = vsel %vm1195, %v1190, 0.0
          %1197 = vst.msk [vmem:[#allocation2 + $0x2b] sm:$0x1] %vm284, %v1196
          %v1198 = vsel %vm310, %v1154, -inf
          %v1199 = vsel %vm311, %v1155, -inf
          %v1200 = vsel %vm268, %v1198, -inf
          %v1201 = vsel %vm268, %v1199, -inf
          %v1202 = vmax.f32 %v1200, %v1201
          %v1203 = vrot.slane %v1202, 4
          %v1204 = vmax.f32 %v1202, %v1203
          %v1205 = vrot.slane %v1204, 2
          %v1206 = vmax.f32 %v1204, %v1205
          %v1207 = vrot.slane %v1206, 1
          %v1208 = vmax.f32 %v1206, %v1207
          %p1209 = pnand %p1147, %p191
          %p1210 = pneg %p1209
          %s1211 = scalar_select %p1210, 1, 0
          %v1212 = vstv %s1211
          %vm1213 = vcmp.eq.s32.totalorder %v1212, 1
          %v1214 = vsel %vm1213, %v1208, 0.0
          %1215 = vst.msk [vmem:[#allocation2 + $0x2c] sm:$0x1] %vm284, %v1214
          %v1216 = vsel %vm332, %v1154, -inf
          %v1217 = vsel %vm333, %v1155, -inf
          %v1218 = vsel %vm268, %v1216, -inf
          %v1219 = vsel %vm268, %v1217, -inf
          %v1220 = vmax.f32 %v1218, %v1219
          %v1221 = vrot.slane %v1220, 4
          %v1222 = vmax.f32 %v1220, %v1221
          %v1223 = vrot.slane %v1222, 2
          %v1224 = vmax.f32 %v1222, %v1223
          %v1225 = vrot.slane %v1224, 1
          %v1226 = vmax.f32 %v1224, %v1225
          %p1227 = pnand %p1147, %p204
          %p1228 = pneg %p1227
          %s1229 = scalar_select %p1228, 1, 0
          %v1230 = vstv %s1229
          %vm1231 = vcmp.eq.s32.totalorder %v1230, 1
          %v1232 = vsel %vm1231, %v1226, 0.0
          %1233 = vst.msk [vmem:[#allocation2 + $0x2d] sm:$0x1] %vm284, %v1232
          %v1234 = vsel %vm354, %v1154, -inf
          %v1235 = vsel %vm355, %v1155, -inf
          %v1236 = vsel %vm268, %v1234, -inf
          %v1237 = vsel %vm268, %v1235, -inf
          %v1238 = vmax.f32 %v1236, %v1237
          %v1239 = vrot.slane %v1238, 4
          %v1240 = vmax.f32 %v1238, %v1239
          %v1241 = vrot.slane %v1240, 2
          %v1242 = vmax.f32 %v1240, %v1241
          %v1243 = vrot.slane %v1242, 1
          %v1244 = vmax.f32 %v1242, %v1243
          %p1245 = pnand %p1147, %p217
          %p1246 = pneg %p1245
          %s1247 = scalar_select %p1246, 1, 0
          %v1248 = vstv %s1247
          %vm1249 = vcmp.eq.s32.totalorder %v1248, 1
          %v1250 = vsel %vm1249, %v1244, 0.0
          %1251 = vst.msk [vmem:[#allocation2 + $0x2e] sm:$0x1] %vm284, %v1250
          %v1252 = vsel %vm376, %v1154, -inf
          %v1253 = vsel %vm377, %v1155, -inf
          %v1254 = vsel %vm268, %v1252, -inf
          %v1255 = vsel %vm268, %v1253, -inf
          %v1256 = vmax.f32 %v1254, %v1255
          %v1257 = vrot.slane %v1256, 4
          %v1258 = vmax.f32 %v1256, %v1257
          %v1259 = vrot.slane %v1258, 2
          %v1260 = vmax.f32 %v1258, %v1259
          %v1261 = vrot.slane %v1260, 1
          %v1262 = vmax.f32 %v1260, %v1261
          %p1263 = pnand %p1147, %p230
          %p1264 = pneg %p1263
          %s1265 = scalar_select %p1264, 1, 0
          %v1266 = vstv %s1265
          %vm1267 = vcmp.eq.s32.totalorder %v1266, 1
          %v1268 = vsel %vm1267, %v1262, 0.0
          %1269 = vst.msk [vmem:[#allocation2 + $0x2f] sm:$0x1] %vm284, %v1268
          %v1270 = vsel %vm398, %v1154, -inf
          %v1271 = vsel %vm399, %v1155, -inf
          %v1272 = vsel %vm268, %v1270, -inf
          %v1273 = vsel %vm268, %v1271, -inf
          %v1274 = vmax.f32 %v1272, %v1273
          %v1275 = vrot.slane %v1274, 4
          %v1276 = vmax.f32 %v1274, %v1275
          %v1277 = vrot.slane %v1276, 2
          %v1278 = vmax.f32 %v1276, %v1277
          %v1279 = vrot.slane %v1278, 1
          %v1280 = vmax.f32 %v1278, %v1279
          %p1281 = pnand %p1147, %p243
          %p1282 = pneg %p1281
          %s1283 = scalar_select %p1282, 1, 0
          %v1284 = vstv %s1283
          %vm1285 = vcmp.eq.s32.totalorder %v1284, 1
          %v1286 = vsel %vm1285, %v1280, 0.0
          %1287 = vst.msk [vmem:[#allocation2 + $0x30] sm:$0x1] %vm284, %v1286
          %v1288 = vld [vmem:[#allocation2] sm:$0xff]
          %v1289 = vld [vmem:[#allocation2 + $0x8] sm:$0xff]
          %v1290 = vld [vmem:[#allocation2 + $0x10] sm:$0xff]
          %v1291 = vld [vmem:[#allocation2 + $0x18] sm:$0xff]
          %v1292 = vld [vmem:[#allocation2 + $0x20] sm:$0xff]
          %v1293 = vld [vmem:[#allocation2 + $0x28] sm:$0xff]
          %v1294 = vld [vmem:[#allocation2 + $0x30] sm:$0x1]
          %v1295 = vpack.c.bf16 %v1288, %v1288
          %v1296 = vpack.c.bf16 %v1289, %v1289
          %v1297 = vpack.c.bf16 %v1290, %v1290
          %v1298 = vpack.c.bf16 %v1291, %v1291
          %v1299 = vpack.c.bf16 %v1292, %v1292
          %v1300 = vpack.c.bf16 %v1293, %v1293
          %v1301 = vpack.c.bf16 %v1294, %v1294
          %s1302 = smul.u32 %s145, 7
          %s1303 = smul.addr %s1302, 4
          %s1304 = scalar_lea.vmem %s139, %s1303
          %vm1305 = vcmask 60416
          %1306 = vst.msk [vmem:[%s1304] sm:$0xf] %vm1305, %v1295
          %1307 = vst.msk [vmem:[%s1304 + $0x4] sm:$0xf] %vm1305, %v1296
          %1308 = vst.msk [vmem:[%s1304 + $0x8] sm:$0xf] %vm1305, %v1297
          %1309 = vst.msk [vmem:[%s1304 + $0xc] sm:$0xf] %vm1305, %v1298
          %1310 = vst.msk [vmem:[%s1304 + $0x10] sm:$0xf] %vm1305, %v1299
          %1311 = vst.msk [vmem:[%s1304 + $0x14] sm:$0xf] %vm1305, %v1300
          %vm1312 = vcmask 57344
          %vm1313 = vsmask.f32 256
          %vm1314 = vmand %vm1312, %vm1313
          %v1315 = vld [vmem:[%s1304 + $0x18] sm:$0x1]
          %v1316 = vsel %vm1314, %v1301, %v1315
          %1317 = vst [vmem:[%s1304 + $0x18] sm:$0x1] %v1316
        $region37: #{tpu_custom_call.1} parent=27 // loop_footer
          %s149 = sadd.s32 1, %s145
        $region38: #{tpu_custom_call.1} parent=27 // loop_footer_branch
          %144 = sbr.rel target = $region34
        $region39: #{tpu_custom_call.1} parent=27 // loop_exit
          _
        %s1318 = smul.u32 8, %s14
        %p1319 = scmp.lt.s32.totalorder %s1318, 127
        %s1320 = scalar_select %p1319, %s1318, 127
        %s1321 = smul.addr %s1320, 7
        %s1322 = smul.addr %s1321, 4
        %s1323 = scalar_lea.vmem %s2, %s1322
        // Predicated region
        $region89: #{tpu_custom_call.1} parent=27 // pred_check
          %p1324 = pneg %p74
        $region90: #{tpu_custom_call.1} parent=27 // pred_check_branch
          %1326 = sbr.rel (%p1324) target = $region92
        $region91: #{tpu_custom_call.1} parent=27 // pred_region
          %s1327 = smul.u32 8, %s14
        $region92: #{tpu_custom_call.1} parent=27 // pred_fallthru
          _
      $region28: #{tpu_custom_call.1} parent=5 // pred_fallthru
        _
      %p1328 = scmp.le.s32.totalorder 2, %s9
      // Predicated region
      $region93: #{tpu_custom_call.1} parent=5 // pred_check
        %p1329 = pneg %p1328
      $region94: #{tpu_custom_call.1} parent=5 // pred_check_branch
        %1331 = sbr.rel (%p1329) target = $region96
      $region95: #{tpu_custom_call.1} parent=5 // pred_region
        %s1332 = ssub.s32 %s9, 2
        // Predicated region
        $region97: #{tpu_custom_call.1} parent=95 // pred_check
          %p1333 = pneg %p80
        $region98: #{tpu_custom_call.1} parent=95 // pred_check_branch
          %1335 = sbr.rel (%p1333) target = $region100
        $region99: #{tpu_custom_call.1} parent=95 // pred_region
          %s1336 = smul.u32 8, %s15
          %p1337 = scmp.lt.s32.totalorder %s1336, 127
          %s1338 = scalar_select %p1337, %s1336, 127
          %s1339 = smul.addr %s1338, 7
          %s1340 = smul.addr %s1339, 4
          %s1341 = scalar_lea.vmem %s2, %s1340
        $region100: #{tpu_custom_call.1} parent=95 // pred_fallthru
          _
      $region96: #{tpu_custom_call.1} parent=5 // pred_fallthru
        _
    $region6: #{tpu_custom_call.1} parent=1 // loop_footer
      %s13 = sadd.s32 1, %s9
    $region7: #{tpu_custom_call.1} parent=1 // loop_footer_branch
      %8 = sbr.rel target = $region3
    $region8: #{tpu_custom_call.1} parent=1 // loop_exit
      _
    %1342 = vsyncpa [#allocation4], 1
    %s1343 = scalar_lea.sflag [#allocation4], 1
    %1344 = vsyncpa %s1343, 1

</llo_original>
